<compile_context>
chip_gen: v7x
topology: tpu7x:2x2x1
jax: 0.10.0
libtpu: 0.0.40
codegen_flags: <defaults>
</compile_context>

<pallas_src>
import functools

import jax
import jax.numpy as jnp
from jax import lax
from jax.experimental import pallas as pl
from jax.experimental.pallas import tpu as pltpu


# ----------------------------------- helpers ----------------------------------------
def _round_up(a, b):
    return ((a + b - 1) // b) * b


def _round_down_to_128(v):
    return max(128, (v // 128) * 128)


def _tpu_defaults():
    """Per-generation tile / VMEM defaults.

    Perf review: tile_t ~256 (v5e, 4x128 MXU), 512 (v6e, ~680 flop/B roofline),
    256-384 (v7x); VMEM is 128 MiB on v5e/v6e but 64 MiB per TensorCore on v7x.
    """
    kind = ""
    try:
        dev = jax.devices()[0]
        if dev.platform == "tpu":
            kind = dev.device_kind.lower()
    except Exception:  # no devices / interpret-only environment
        pass
    if "v6" in kind:                       # v6e (Trillium): big VMEM, high roofline
        cfg = dict(tile_t=512, tile_h=1024, vmem_limit_bytes=100 * 1024 * 1024)
    elif "v5" in kind:                     # v5e / v5p
        cfg = dict(tile_t=256, tile_h=512, vmem_limit_bytes=100 * 1024 * 1024)
    elif "7" in kind:                      # v7x: only 64 MiB VMEM per TC
        cfg = dict(tile_t=256, tile_h=512, vmem_limit_bytes=56 * 1024 * 1024)
    else:                                  # unknown / CPU interpret: conservative
        cfg = dict(tile_t=256, tile_h=512, vmem_limit_bytes=56 * 1024 * 1024)
    try:
        cap = pltpu.get_tpu_info().vmem_capacity_bytes
        cfg["vmem_limit_bytes"] = min(cfg["vmem_limit_bytes"], int(cap * 7 // 8))
    except Exception:
        pass
    return cfg


def _vmem_footprint_bytes(tile_t, tile_h, D, e_total, w_itemsize, out_itemsize):
    """Conservative per-step VMEM estimate (every pipelined operand double-buffered)."""
    lane = 128
    db = 2
    in_bytes = (tile_t * D * 4                          # x block (f32)
                + D * max(e_total, lane) * 4            # gate W
                + max(e_total, lane) * 4                # gate b
                + D * tile_h * w_itemsize               # W1 chunk
                + max(tile_h, lane) * 4                 # b1 chunk
                + tile_h * D * w_itemsize               # W2 chunk
                + D * 4)                                # b2
    out_bytes = tile_t * D * out_itemsize
    scratch = (tile_t * D * 4                           # f32 output accumulator
               + tile_t * max(e_total, lane) * 4        # dispatch mask
               + tile_t * lane * 4                      # per-expert gate column
               + tile_t * D * w_itemsize)               # compute-dtype copy of x
    return db * (in_bytes + out_bytes) + scratch


# ------------------------- Fused router + expert-FFN kernel -------------------------
# grid = (token_tiles, E_total, H_chunks); expert and hidden axes are reductions
# ("arbitrary"), the (tile_t, D) output block stays resident and accumulates
#   acc += mask[:, e] * (ReLU(x @ W1_e + b1_e) @ W2_e + b2_e)
def fused_moe_kernel(x_ref, wg_ref, bg_ref, w1_ref, b1_ref, w2_ref, b2_ref,
                     o_ref, acc_ref, mask_ref, w_ref, xc_ref, *, top_k, compute_dtype):
    e = pl.program_id(1)
    h = pl.program_id(2)

    # ---- once per token tile: router (f32) + hoisted compute-dtype cast of x --------
    @pl.when((e == 0) & (h == 0))
    def _per_token_tile():
        xf = x_ref[...].astype(jnp.float32)
        xc_ref[...] = xf.astype(compute_dtype)          # cast hoisted out of inner loop
        logits = jnp.dot(xf, wg_ref[...],
                         preferred_element_type=jnp.float32) + bg_ref[...]
        m = jnp.max(logits, axis=-1, keepdims=True)
        ex = jnp.exp(logits - m)
        gates = ex / jnp.sum(ex, axis=-1, keepdims=True)
        e_total = gates.shape[-1]
        col = lax.broadcasted_iota(jnp.int32, gates.shape, 1)
        remaining = gates
        mask = jnp.zeros_like(gates)
        for _ in range(top_k):       # small static int -> unrolled iterative argmax
            mx = jnp.max(remaining, axis=-1, keepdims=True)
            is_max = remaining == mx
            first = jnp.min(jnp.where(is_max, col, e_total), axis=-1, keepdims=True)
            onehot = col == first    # first occurrence (lowest index) on ties
            mask = mask + jnp.where(onehot, gates, 0.0)
            remaining = jnp.where(onehot, -jnp.inf, remaining)
        mask_ref[...] = mask
        acc_ref[...] = jnp.zeros_like(acc_ref)

    # ---- once per (tile, expert): gate column + second-Linear bias -------------------
    @pl.when(h == 0)
    def _per_expert():
        col = lax.broadcasted_iota(jnp.int32, mask_ref.shape, 1)
        w_ref[...] = jnp.sum(jnp.where(col == e, mask_ref[...], 0.0),
                             axis=-1, keepdims=True)            # (tile_t, 1)
        acc_ref[...] += w_ref[...] * b2_ref[0]                  # b2 added once/expert

    # ---- expert FFN on this hidden chunk (compute_dtype MXU, f32 accumulate) ---------
    hact = jnp.dot(xc_ref[...], w1_ref[0],
                   preferred_element_type=jnp.float32) + b1_ref[0]
    hact = jnp.maximum(hact, 0.0)                               # ReLU (f32)
    y = jnp.dot(hact.astype(compute_dtype), w2_ref[0],
                preferred_element_type=jnp.float32)             # (tile_t, D)
    acc_ref[...] += w_ref[...] * y

    @pl.when((e == pl.num_programs(1) - 1) & (h == pl.num_programs(2) - 1))
    def _writeback():
        o_ref[...] = acc_ref[...].astype(o_ref.dtype)


# --------------------------------------- Wrapper -------------------------------------
def moe_forward(x, params, *, top_k, tile_t=None, tile_h=None,
                compute_dtype=jnp.bfloat16, vmem_limit_bytes=None):
    B, S, D = x.shape
    T = B * S
    wg, bg, w1, b1, w2, b2 = params
    e_total = wg.shape[1]
    H = w1.shape[-1]
    assert top_k <= e_total, "top_k can't exceed number of experts"

    cfg = _tpu_defaults()
    if tile_t is None:
        tile_t = cfg["tile_t"]
    if tile_h is None:
        tile_h = cfg["tile_h"]
    if vmem_limit_bytes is None:
        vmem_limit_bytes = cfg["vmem_limit_bytes"]

    # ---- tile sizing: lane/MXU aligned, capped by problem size, shrunk to VMEM ------
    tile_t = _round_down_to_128(min(tile_t, _round_up(T, 128)))
    tile_h = _round_down_to_128(min(tile_h, _round_up(H, 128)))
    w_itemsize = jnp.dtype(compute_dtype).itemsize
    out_itemsize = jnp.dtype(x.dtype).itemsize
    budget = int(vmem_limit_bytes * 0.9)
    while (_vmem_footprint_bytes(tile_t, tile_h, D, e_total, w_itemsize,
                                 out_itemsize) > budget and tile_h > 128):
        tile_h = _round_down_to_128(tile_h // 2)
    while (_vmem_footprint_bytes(tile_t, tile_h, D, e_total, w_itemsize,
                                 out_itemsize) > budget and tile_t > 128):
        tile_t = _round_down_to_128(tile_t // 2)

    # ---- pad tokens to a tile_t multiple (padded rows compute garbage, sliced off) ---
    n_t = pl.cdiv(T, tile_t)
    T_pad = n_t * tile_t
    x_flat = x.reshape(T, D).astype(jnp.float32)
    if T_pad != T:
        x_flat = jnp.pad(x_flat, ((0, T_pad - T), (0, 0)))

    # ---- pad hidden dim to a tile_h multiple (zero W1 cols / b1 / W2 rows => no-op) ---
    H_pad = _round_up(H, tile_h)
    n_h = H_pad // tile_h
    if H_pad != H:
        w1 = jnp.pad(w1, ((0, 0), (0, 0), (0, H_pad - H)))
        b1 = jnp.pad(b1, ((0, 0), (0, H_pad - H)))
        w2 = jnp.pad(w2, ((0, 0), (0, H_pad - H), (0, 0)))

    # ---- dtype plumbing: FFN weights in compute_dtype (bf16 halves weight DMA and
    # feeds the MXU natively); router gate, biases, ReLU, accumulator stay f32. --------
    w1c = w1.astype(compute_dtype)
    w2c = w2.astype(compute_dtype)
    wgf = wg.astype(jnp.float32)
    bg2 = bg.reshape(1, e_total).astype(jnp.float32)
    b1r = b1.reshape(e_total, 1, H_pad).astype(jnp.float32)
    b2r = b2.reshape(e_total, 1, D).astype(jnp.float32)

    kernel = functools.partial(fused_moe_kernel, top_k=top_k,
                               compute_dtype=compute_dtype)

    out_flat = pl.pallas_call(
        kernel,
        out_shape=jax.ShapeDtypeStruct((T_pad, D), x.dtype),
        grid_spec=pltpu.PrefetchScalarGridSpec(
            num_scalar_prefetch=0,
            grid=(n_t, e_total, n_h),
            in_specs=[
                pl.BlockSpec((tile_t, D), lambda i, e, h: (i, 0)),        # x
                pl.BlockSpec((D, e_total), lambda i, e, h: (0, 0)),       # gate W
                pl.BlockSpec((1, e_total), lambda i, e, h: (0, 0)),       # gate b
                pl.BlockSpec((1, D, tile_h), lambda i, e, h: (e, 0, h)),  # W1 chunk
                pl.BlockSpec((1, 1, tile_h), lambda i, e, h: (e, 0, h)),  # b1 chunk
                pl.BlockSpec((1, tile_h, D), lambda i, e, h: (e, h, 0)),  # W2 chunk
                pl.BlockSpec((1, 1, D), lambda i, e, h: (e, 0, 0)),       # b2
            ],
            out_specs=pl.BlockSpec((tile_t, D), lambda i, e, h: (i, 0)),
            scratch_shapes=[
                pltpu.VMEM((tile_t, D), jnp.float32),        # f32 output accumulator
                pltpu.VMEM((tile_t, e_total), jnp.float32),  # fused dispatch mask
                pltpu.VMEM((tile_t, 1), jnp.float32),        # gate weight of expert e
                pltpu.VMEM((tile_t, D), compute_dtype),      # compute-dtype copy of x
            ]),
        compiler_params=pltpu.CompilerParams(
            dimension_semantics=("parallel", "arbitrary", "arbitrary"),
            vmem_limit_bytes=int(vmem_limit_bytes)),
    )(x_flat, wgf, bg2, w1c, b1r, w2c, b2r)

    return out_flat[:T].reshape(B, S, D)


# ------------------------------- Pure-JAX reference -----------------------------------
def ref_forward(x, params, top_k, compute_dtype=jnp.float32):
    B, S, D = x.shape
    xf = x.reshape(-1, D).astype(jnp.float32)
    wg, bg, w1, b1, w2, b2 = params
    logits = xf @ wg + bg
    gates = jax.nn.softmax(logits, axis=-1)
    vals, idx = lax.top_k(gates, top_k)
    mask = jnp.zeros_like(gates)
    mask = mask.at[jnp.arange(xf.shape[0])[:, None], idx].set(vals)
    xc = xf.astype(compute_dtype)
    hid = jnp.einsum('td,edh->teh', xc, w1.astype(compute_dtype),
                     preferred_element_type=jnp.float32) + b1[None]
    hid = jnp.maximum(hid, 0.0)
    y = jnp.einsum('teh,ehd->ted', hid.astype(compute_dtype), w2.astype(compute_dtype),
                   preferred_element_type=jnp.float32) + b2[None]
    out = jnp.sum(mask[..., None] * y, axis=1)
    return out.reshape(B, S, D)


if __name__ == "__main__":
    # Module config (small synthetic): simulate world_size=2, 2 experts per "GPU"
    d_model = 32
    top_k = 2
    world_size = 2
    num_experts_per_gpu = 2
    e_total = world_size * num_experts_per_gpu       # 4
    hidden = 4 * d_model                             # 128
    B, S = 2, 8

    key = jax.random.PRNGKey(0)
    ks = jax.random.split(key, 8)
    x = jax.random.normal(ks[0], (B, S, d_model), dtype=jnp.float32)

    # Deterministic parameter init (router gate + per-expert 2-layer FFN)
    wg = 0.1 * jax.random.normal(ks[1], (d_model, e_total), dtype=jnp.float32)
    bg = 0.1 * jax.random.normal(ks[2], (e_total,), dtype=jnp.float32)
    w1 = 0.1 * jax.random.normal(ks[3], (e_total, d_model, hidden), dtype=jnp.float32)
    b1 = 0.1 * jax.random.normal(ks[4], (e_total, hidden), dtype=jnp.float32)
    w2 = 0.1 * jax.random.normal(ks[5], (e_total, hidden, d_model), dtype=jnp.float32)
    b2 = 0.1 * jax.random.normal(ks[6], (e_total, d_model), dtype=jnp.float32)
    params = (wg, bg, w1, b1, w2, b2)

    # 1) strict check with exact f32 compute (runs on any backend, incl. interpret/CPU)
    out_f32 = moe_forward(x, params, top_k=top_k, compute_dtype=jnp.float32)
    out_f32 = jax.block_until_ready(out_f32)
    ref_f32 = ref_forward(x, params, top_k, compute_dtype=jnp.float32)
    assert out_f32.shape == (B, S, d_model)
    assert jnp.allclose(out_f32, ref_f32, atol=1e-4, rtol=1e-4), "f32 mismatch vs reference"

    # 2) bf16-weight / MXU production path: only exercised on a real TPU backend.
    #    The CPU interpret backend cannot execute BF16 x BF16 = F32 dots (DotThunk),
    #    which is what broke the previous run.
    if jax.default_backend() == "tpu":
        out_bf16 = moe_forward(x, params, top_k=top_k, compute_dtype=jnp.bfloat16)
        out_bf16 = jax.block_until_ready(out_bf16)
        ref_bf16 = ref_forward(x, params, top_k, compute_dtype=jnp.bfloat16)
        assert out_bf16.shape == (B, S, d_model)
        assert jnp.allclose(out_bf16, ref_bf16, atol=2e-2, rtol=2e-2), \
            "bf16 mismatch vs reference"

    print("KERNEL_OK")
</pallas_src>

<mosaic_0001>
module attributes {stable_mosaic.version = 11 : i64} {
  func.func @fused_moe_kernel(%arg0: i32, %arg1: i32, %arg2: i32, %arg3: memref<128x32xf32, #tpu.memory_space<vmem>>, %arg4: memref<32x4xf32, #tpu.memory_space<vmem>>, %arg5: memref<1x4xf32, #tpu.memory_space<vmem>>, %arg6: memref<1x32x128xf32, #tpu.memory_space<vmem>>, %arg7: memref<1x1x128xf32, #tpu.memory_space<vmem>>, %arg8: memref<1x128x32xf32, #tpu.memory_space<vmem>>, %arg9: memref<1x1x32xf32, #tpu.memory_space<vmem>>, %arg10: memref<128x32xf32, #tpu.memory_space<vmem>>, %arg11: memref<128x32xf32, #tpu.memory_space<vmem>>, %arg12: memref<128x4xf32, #tpu.memory_space<vmem>>, %arg13: memref<128x1xf32, #tpu.memory_space<vmem>>, %arg14: memref<128x32xf32, #tpu.memory_space<vmem>>) attributes {dimension_semantics = [#tpu.dimension_semantics<parallel>, #tpu.dimension_semantics<arbitrary>, #tpu.dimension_semantics<arbitrary>], iteration_bounds = array<i64: 1, 4, 1>, scalar_prefetch = 0 : i64, scratch_operands = 4 : i64, tpu.core_type = #tpu.core_type<tc>, window_params = [{transform_indices = @transform_0, window_bounds = array<i64: 128, 32>}, {pipeline_mode = #tpu.pipeline_mode<synchronous>, transform_indices = @transform_1, window_bounds = array<i64: 32, 4>}, {pipeline_mode = #tpu.pipeline_mode<synchronous>, transform_indices = @transform_2, window_bounds = array<i64: 1, 4>}, {transform_indices = @transform_3, window_bounds = array<i64: 1, 32, 128>}, {transform_indices = @transform_4, window_bounds = array<i64: 1, 1, 128>}, {transform_indices = @transform_5, window_bounds = array<i64: 1, 128, 32>}, {transform_indices = @transform_6, window_bounds = array<i64: 1, 1, 32>}, {transform_indices = @transform_7, window_bounds = array<i64: 128, 32>}]} {
    %c0_i32 = arith.constant 0 : i32
    %0 = arith.cmpi eq, %arg1, %c0_i32 : i32
    %c0_i32_0 = arith.constant 0 : i32
    %1 = arith.cmpi eq, %arg2, %c0_i32_0 : i32
    %2 = arith.andi %0, %1 : i1
    %3 = arith.extui %2 : i1 to i32
    %c0_i32_1 = arith.constant 0 : i32
    %4 = arith.cmpi ne, %3, %c0_i32_1 : i32
    scf.if %4 {
      %c0_24 = arith.constant 0 : index
      %c0_25 = arith.constant 0 : index
      %32 = vector.load %arg3[%c0_24, %c0_25] : memref<128x32xf32, #tpu.memory_space<vmem>>, vector<128x32xf32>
      %c0_26 = arith.constant 0 : index
      %c0_27 = arith.constant 0 : index
      %33 = vector.load %arg14[%c0_26, %c0_27] : memref<128x32xf32, #tpu.memory_space<vmem>>, vector<128x32xf32>
      tpu.vector_store %arg14[%c0_26, %c0_27], %32 {strides = array<i32>} : memref<128x32xf32, #tpu.memory_space<vmem>>, vector<128x32xf32>,
      %c0_28 = arith.constant 0 : index
      %c0_29 = arith.constant 0 : index
      %34 = vector.load %arg4[%c0_28, %c0_29] : memref<32x4xf32, #tpu.memory_space<vmem>>, vector<32x4xf32>
      %cst_30 = arith.constant dense<0.000000e+00> : vector<128x4xf32>
      %35 = tpu.matmul %32, %34, %cst_30 {dimension_numbers = #tpu.dot_dimension_numbers<[1], [0], [0], [1], [0, 0, 1, 1], [], []>} : vector<128x32xf32>, vector<32x4xf32>, vector<128x4xf32> -> vector<128x4xf32>
      %c0_31 = arith.constant 0 : index
      %c0_32 = arith.constant 0 : index
      %36 = vector.load %arg5[%c0_31, %c0_32] : memref<1x4xf32, #tpu.memory_space<vmem>>, vector<1x4xf32>
      %37 = vector.broadcast %36 : vector<1x4xf32> to vector<128x4xf32>
      %38 = arith.addf %35, %37 : vector<128x4xf32>
      %cst_33 = arith.constant dense<0xFF800000> : vector<128xf32>
      %39 = vector.multi_reduction <maximumf>, %38, %cst_33 [1] : vector<128x4xf32> to vector<128xf32>
      %40 = vector.shape_cast %39 : vector<128xf32> to vector<128x1xf32>
      %41 = vector.broadcast %40 : vector<128x1xf32> to vector<128x4xf32>
      %42 = arith.subf %38, %41 : vector<128x4xf32>
      %43 = math.exp %42 : vector<128x4xf32>
      %cst_34 = arith.constant dense<0.000000e+00> : vector<128xf32>
      %44 = vector.multi_reduction <add>, %43, %cst_34 [1] : vector<128x4xf32> to vector<128xf32>
      %45 = vector.shape_cast %44 : vector<128xf32> to vector<128x1xf32>
      %46 = vector.broadcast %45 : vector<128x1xf32> to vector<128x4xf32>
      %47 = arith.divf %43, %46 : vector<128x4xf32>
      %48 = tpu.iota {dimensions = array<i32: 1>} : vector<128x4xi32>
      %cst_35 = arith.constant 0.000000e+00 : f32
      %49 = vector.broadcast %cst_35 : f32 to vector<128x4xf32>
      %cst_36 = arith.constant dense<0xFF800000> : vector<128xf32>
      %50 = vector.multi_reduction <maximumf>, %47, %cst_36 [1] : vector<128x4xf32> to vector<128xf32>
      %51 = vector.shape_cast %50 : vector<128xf32> to vector<128x1xf32>
      %52 = vector.broadcast %51 : vector<128x1xf32> to vector<128x4xf32>
      %53 = arith.cmpf oeq, %47, %52 : vector<128x4xf32>
      %c4_i32 = arith.constant 4 : i32
      %54 = vector.broadcast %c4_i32 : i32 to vector<128x4xi32>
      %55 = arith.select %53, %48, %54 : vector<128x4xi1>, vector<128x4xi32>
      %cst_37 = arith.constant dense<2147483647> : vector<128xi32>
      %56 = vector.multi_reduction <minsi>, %55, %cst_37 [1] : vector<128x4xi32> to vector<128xi32>
      %57 = vector.shape_cast %56 : vector<128xi32> to vector<128x1xi32>
      %58 = vector.broadcast %57 : vector<128x1xi32> to vector<128x4xi32>
      %59 = arith.cmpi eq, %48, %58 : vector<128x4xi32>
      %cst_38 = arith.constant 0.000000e+00 : f32
      %60 = vector.broadcast %cst_38 : f32 to vector<128x4xf32>
      %61 = arith.select %59, %47, %60 : vector<128x4xi1>, vector<128x4xf32>
      %62 = arith.addf %49, %61 : vector<128x4xf32>
      %cst_39 = arith.constant 0xFF800000 : f32
      %63 = vector.broadcast %cst_39 : f32 to vector<128x4xf32>
      %64 = arith.select %59, %63, %47 : vector<128x4xi1>, vector<128x4xf32>
      %cst_40 = arith.constant dense<0xFF800000> : vector<128xf32>
      %65 = vector.multi_reduction <maximumf>, %64, %cst_40 [1] : vector<128x4xf32> to vector<128xf32>
      %66 = vector.shape_cast %65 : vector<128xf32> to vector<128x1xf32>
      %67 = vector.broadcast %66 : vector<128x1xf32> to vector<128x4xf32>
      %68 = arith.cmpf oeq, %64, %67 : vector<128x4xf32>
      %c4_i32_41 = arith.constant 4 : i32
      %69 = vector.broadcast %c4_i32_41 : i32 to vector<128x4xi32>
      %70 = arith.select %68, %48, %69 : vector<128x4xi1>, vector<128x4xi32>
      %cst_42 = arith.constant dense<2147483647> : vector<128xi32>
      %71 = vector.multi_reduction <minsi>, %70, %cst_42 [1] : vector<128x4xi32> to vector<128xi32>
      %72 = vector.shape_cast %71 : vector<128xi32> to vector<128x1xi32>
      %73 = vector.broadcast %72 : vector<128x1xi32> to vector<128x4xi32>
      %74 = arith.cmpi eq, %48, %73 : vector<128x4xi32>
      %cst_43 = arith.constant 0.000000e+00 : f32
      %75 = vector.broadcast %cst_43 : f32 to vector<128x4xf32>
      %76 = arith.select %74, %47, %75 : vector<128x4xi1>, vector<128x4xf32>
      %77 = arith.addf %62, %76 : vector<128x4xf32>
      %c0_44 = arith.constant 0 : index
      %c0_45 = arith.constant 0 : index
      %78 = vector.load %arg12[%c0_44, %c0_45] : memref<128x4xf32, #tpu.memory_space<vmem>>, vector<128x4xf32>
      tpu.vector_store %arg12[%c0_44, %c0_45], %77 {strides = array<i32>} : memref<128x4xf32, #tpu.memory_space<vmem>>, vector<128x4xf32>,
      %cst_46 = arith.constant 0.000000e+00 : f32
      %79 = vector.broadcast %cst_46 : f32 to vector<128x32xf32>
      %c0_47 = arith.constant 0 : index
      %c0_48 = arith.constant 0 : index
      %80 = vector.load %arg11[%c0_47, %c0_48] : memref<128x32xf32, #tpu.memory_space<vmem>>, vector<128x32xf32>
      tpu.vector_store %arg11[%c0_47, %c0_48], %79 {strides = array<i32>} : memref<128x32xf32, #tpu.memory_space<vmem>>, vector<128x32xf32>,
    } else {
    }
    %c0_i32_2 = arith.constant 0 : i32
    %5 = arith.cmpi eq, %arg2, %c0_i32_2 : i32
    %6 = arith.extui %5 : i1 to i32
    %c0_i32_3 = arith.constant 0 : i32
    %7 = arith.cmpi ne, %6, %c0_i32_3 : i32
    scf.if %7 {
      %32 = tpu.iota {dimensions = array<i32: 1>} : vector<128x4xi32>
      %33 = vector.broadcast %arg1 : i32 to vector<128x4xi32>
      %34 = arith.cmpi eq, %32, %33 : vector<128x4xi32>
      %c0_24 = arith.constant 0 : index
      %c0_25 = arith.constant 0 : index
      %35 = vector.load %arg12[%c0_24, %c0_25] : memref<128x4xf32, #tpu.memory_space<vmem>>, vector<128x4xf32>
      %cst_26 = arith.constant 0.000000e+00 : f32
      %36 = vector.broadcast %cst_26 : f32 to vector<128x4xf32>
      %37 = arith.select %34, %35, %36 : vector<128x4xi1>, vector<128x4xf32>
      %cst_27 = arith.constant dense<0.000000e+00> : vector<128xf32>
      %38 = vector.multi_reduction <add>, %37, %cst_27 [1] : vector<128x4xf32> to vector<128xf32>
      %39 = vector.shape_cast %38 : vector<128xf32> to vector<128x1xf32>
      %c0_28 = arith.constant 0 : index
      %c0_29 = arith.constant 0 : index
      %40 = vector.load %arg13[%c0_28, %c0_29] : memref<128x1xf32, #tpu.memory_space<vmem>>, vector<128x1xf32>
      tpu.vector_store %arg13[%c0_28, %c0_29], %39 {strides = array<i32>} : memref<128x1xf32, #tpu.memory_space<vmem>>, vector<128x1xf32>,
      %c0_30 = arith.constant 0 : index
      %c0_31 = arith.constant 0 : index
      %41 = vector.load %arg11[%c0_30, %c0_31] : memref<128x32xf32, #tpu.memory_space<vmem>>, vector<128x32xf32>
      %c0_32 = arith.constant 0 : index
      %c0_33 = arith.constant 0 : index
      %42 = vector.load %arg13[%c0_32, %c0_33] : memref<128x1xf32, #tpu.memory_space<vmem>>, vector<128x1xf32>
      %c0_34 = arith.constant 0 : index
      %c0_35 = arith.constant 0 : index
      %c0_36 = arith.constant 0 : index
      %43 = vector.load %arg9[%c0_34, %c0_35, %c0_36] : memref<1x1x32xf32, #tpu.memory_space<vmem>>, vector<1x1x32xf32>
      %44 = vector.shape_cast %43 : vector<1x1x32xf32> to vector<1x32xf32>
      %45 = vector.broadcast %42 : vector<128x1xf32> to vector<128x32xf32>
      %46 = vector.broadcast %44 : vector<1x32xf32> to vector<128x32xf32>
      %47 = arith.mulf %45, %46 : vector<128x32xf32>
      %48 = arith.addf %41, %47 : vector<128x32xf32>
      %c0_37 = arith.constant 0 : index
      %c0_38 = arith.constant 0 : index
      %49 = vector.load %arg11[%c0_37, %c0_38] : memref<128x32xf32, #tpu.memory_space<vmem>>, vector<128x32xf32>
      tpu.vector_store %arg11[%c0_37, %c0_38], %48 {strides = array<i32>} : memref<128x32xf32, #tpu.memory_space<vmem>>, vector<128x32xf32>,
    } else {
    }
    %c0 = arith.constant 0 : index
    %c0_4 = arith.constant 0 : index
    %8 = vector.load %arg14[%c0, %c0_4] : memref<128x32xf32, #tpu.memory_space<vmem>>, vector<128x32xf32>
    %c0_5 = arith.constant 0 : index
    %c0_6 = arith.constant 0 : index
    %c0_7 = arith.constant 0 : index
    %9 = vector.load %arg6[%c0_5, %c0_6, %c0_7] : memref<1x32x128xf32, #tpu.memory_space<vmem>>, vector<1x32x128xf32>
    %10 = vector.shape_cast %9 : vector<1x32x128xf32> to vector<32x128xf32>
    %cst = arith.constant dense<0.000000e+00> : vector<128x128xf32>
    %11 = tpu.matmul %8, %10, %cst {dimension_numbers = #tpu.dot_dimension_numbers<[1], [0], [0], [1], [0, 0, 1, 1], [], []>} : vector<128x32xf32>, vector<32x128xf32>, vector<128x128xf32> -> vector<128x128xf32>
    %c0_8 = arith.constant 0 : index
    %c0_9 = arith.constant 0 : index
    %c0_10 = arith.constant 0 : index
    %12 = vector.load %arg7[%c0_8, %c0_9, %c0_10] : memref<1x1x128xf32, #tpu.memory_space<vmem>>, vector<1x1x128xf32>
    %13 = vector.shape_cast %12 : vector<1x1x128xf32> to vector<1x128xf32>
    %14 = vector.broadcast %13 : vector<1x128xf32> to vector<128x128xf32>
    %15 = arith.addf %11, %14 : vector<128x128xf32>
    %cst_11 = arith.constant 0.000000e+00 : f32
    %16 = vector.broadcast %cst_11 : f32 to vector<128x128xf32>
    %17 = arith.maximumf %15, %16 : vector<128x128xf32>
    %c0_12 = arith.constant 0 : index
    %c0_13 = arith.constant 0 : index
    %c0_14 = arith.constant 0 : index
    %18 = vector.load %arg8[%c0_12, %c0_13, %c0_14] : memref<1x128x32xf32, #tpu.memory_space<vmem>>, vector<1x128x32xf32>
    %19 = vector.shape_cast %18 : vector<1x128x32xf32> to vector<128x32xf32>
    %cst_15 = arith.constant dense<0.000000e+00> : vector<128x32xf32>
    %20 = tpu.matmul %17, %19, %cst_15 {dimension_numbers = #tpu.dot_dimension_numbers<[1], [0], [0], [1], [0, 0, 1, 1], [], []>} : vector<128x128xf32>, vector<128x32xf32>, vector<128x32xf32> -> vector<128x32xf32>
    %c0_16 = arith.constant 0 : index
    %c0_17 = arith.constant 0 : index
    %21 = vector.load %arg11[%c0_16, %c0_17] : memref<128x32xf32, #tpu.memory_space<vmem>>, vector<128x32xf32>
    %c0_18 = arith.constant 0 : index
    %c0_19 = arith.constant 0 : index
    %22 = vector.load %arg13[%c0_18, %c0_19] : memref<128x1xf32, #tpu.memory_space<vmem>>, vector<128x1xf32>
    %23 = vector.broadcast %22 : vector<128x1xf32> to vector<128x32xf32>
    %24 = arith.mulf %23, %20 : vector<128x32xf32>
    %25 = arith.addf %21, %24 : vector<128x32xf32>
    %c0_20 = arith.constant 0 : index
    %c0_21 = arith.constant 0 : index
    %26 = vector.load %arg11[%c0_20, %c0_21] : memref<128x32xf32, #tpu.memory_space<vmem>>, vector<128x32xf32>
    tpu.vector_store %arg11[%c0_20, %c0_21], %25 {strides = array<i32>} : memref<128x32xf32, #tpu.memory_space<vmem>>, vector<128x32xf32>,
    %c3_i32 = arith.constant 3 : i32
    %27 = arith.cmpi eq, %arg1, %c3_i32 : i32
    %c0_i32_22 = arith.constant 0 : i32
    %28 = arith.cmpi eq, %arg2, %c0_i32_22 : i32
    %29 = arith.andi %27, %28 : i1
    %30 = arith.extui %29 : i1 to i32
    %c0_i32_23 = arith.constant 0 : i32
    %31 = arith.cmpi ne, %30, %c0_i32_23 : i32
    scf.if %31 {
      %c0_24 = arith.constant 0 : index
      %c0_25 = arith.constant 0 : index
      %32 = vector.load %arg11[%c0_24, %c0_25] : memref<128x32xf32, #tpu.memory_space<vmem>>, vector<128x32xf32>
      %c0_26 = arith.constant 0 : index
      %c0_27 = arith.constant 0 : index
      %33 = vector.load %arg10[%c0_26, %c0_27] : memref<128x32xf32, #tpu.memory_space<vmem>>, vector<128x32xf32>
      tpu.vector_store %arg10[%c0_26, %c0_27], %32 {strides = array<i32>} : memref<128x32xf32, #tpu.memory_space<vmem>>, vector<128x32xf32>,
    } else {
    }
    return
  }
  func.func @transform_0(%arg0: i32, %arg1: i32, %arg2: i32) -> (i32, i32) {
    %c0_i32 = arith.constant 0 : i32
    %c0_i32_0 = arith.constant 0 : i32
    return %arg0, %c0_i32 : i32, i32
  }
  func.func @transform_1(%arg0: i32, %arg1: i32, %arg2: i32) -> (i32, i32) {
    %c0_i32 = arith.constant 0 : i32
    %c0_i32_0 = arith.constant 0 : i32
    %c0_i32_1 = arith.constant 0 : i32
    return %c0_i32, %c0_i32_0 : i32, i32
  }
  func.func @transform_2(%arg0: i32, %arg1: i32, %arg2: i32) -> (i32, i32) {
    %c0_i32 = arith.constant 0 : i32
    %c0_i32_0 = arith.constant 0 : i32
    %c0_i32_1 = arith.constant 0 : i32
    return %c0_i32, %c0_i32_0 : i32, i32
  }
  func.func @transform_3(%arg0: i32, %arg1: i32, %arg2: i32) -> (i32, i32, i32) {
    %c0_i32 = arith.constant 0 : i32
    %c0_i32_0 = arith.constant 0 : i32
    return %arg1, %c0_i32, %arg2 : i32, i32, i32
  }
  func.func @transform_4(%arg0: i32, %arg1: i32, %arg2: i32) -> (i32, i32, i32) {
    %c0_i32 = arith.constant 0 : i32
    %c0_i32_0 = arith.constant 0 : i32
    return %arg1, %c0_i32, %arg2 : i32, i32, i32
  }
  func.func @transform_5(%arg0: i32, %arg1: i32, %arg2: i32) -> (i32, i32, i32) {
    %c0_i32 = arith.constant 0 : i32
    %c0_i32_0 = arith.constant 0 : i32
    return %arg1, %arg2, %c0_i32 : i32, i32, i32
  }
  func.func @transform_6(%arg0: i32, %arg1: i32, %arg2: i32) -> (i32, i32, i32) {
    %c0_i32 = arith.constant 0 : i32
    %c0_i32_0 = arith.constant 0 : i32
    %c0_i32_1 = arith.constant 0 : i32
    return %arg1, %c0_i32, %c0_i32_0 : i32, i32, i32
  }
  func.func @transform_7(%arg0: i32, %arg1: i32, %arg2: i32) -> (i32, i32) {
    %c0_i32 = arith.constant 0 : i32
    %c0_i32_0 = arith.constant 0 : i32
    return %arg0, %c0_i32 : i32, i32
  }
}

</mosaic_0001>

<llo_original>
// kernel: tpu_custom_call.1
$region0: #{tpu_custom_call.1}
  #allocation0 [shape = 'u32[]', space=smem, size = 0x4, offset = 0x4, fixed_abs, tag = 'smem constant byte address 0x4 - core index']
  #allocation1 [shape = 'u32[144,128]{1,0:T(1,128)}', space=vmem, size = 0x12000, scoped, tag = 'internal scratch']
  #allocation2 [shape = 'f32[128,32]{1,0:T(8,128)}', space=vmem, size = 0x10000, scoped, tag = 'scratch operand']
  #allocation3 [shape = 'f32[128,4]{1,0:T(8,128)}', space=vmem, size = 0x10000, scoped, tag = 'scratch operand']
  #allocation4 [shape = 'f32[128,1]{1,0:T(8,128)}', space=vmem, size = 0x10000, scoped, tag = 'scratch operand']
  #allocation5 [shape = 'f32[128,32]{1,0:T(8,128)}', space=vmem, size = 0x10000, scoped, tag = 'scratch operand']
  %s0 = inlined_call_operand.vmem [shape: f32[128,32], index: 0, kind: input, shape index: {}]
  %s1 = inlined_call_operand.vmem [shape: f32[32,4], index: 1, kind: input, shape index: {}]
  %s2 = inlined_call_operand.vmem [shape: f32[1,4], index: 2, kind: input, shape index: {}]
  %s3 = inlined_call_operand.vmem [shape: f32[4,32,128], index: 3, kind: input, shape index: {}]
  %s4 = inlined_call_operand.vmem [shape: f32[4,1,128], index: 4, kind: input, shape index: {}]
  %s5 = inlined_call_operand.vmem [shape: f32[4,128,32], index: 5, kind: input, shape index: {}]
  %s6 = inlined_call_operand.vmem [shape: f32[4,1,32], index: 6, kind: input, shape index: {}]
  %s7 = inlined_call_operand.vmem [shape: f32[128,32], index: 7, kind: output, shape index: {}]
  %s8 = sld [smem:[#allocation0]]
  $region73: #{tpu_custom_call.1} parent=0
    _
  %s10 = ssub.s32 1, %s8
  %s11 = scalar_select 0, %s10, %s8
  loop: start=0, step=1, limit=6
  $region2: #{tpu_custom_call.1} parent=0 // loop_pre_header
    _
  $region3: #{tpu_custom_call.1} parent=0 // loop_header
    %s13 = sphi 0, %s17
    %p14 = scmp.ge.s32.totalorder %s13, 6
    %s20 = sphi 0, %s39
    %s21 = sphi 0, %s35
    %s22 = sphi 0, %s31
    %s23 = sphi 0, %s20
    %s24 = sphi 0, %s21
    %s25 = sphi 0, %s22
    %s26 = sphi 0, %s23
    %s27 = sphi 0, %s24
    %s28 = sphi 0, %s25
    %s42 = sphi 0, %s44
    %s45 = sphi 0, %s42
    %s46 = sphi 0, %s45
    %s62 = sphi 0, %s46
    %s66 = sphi 0, %s66
    %s68 = sphi 0, %s66
    %s69 = sphi 0, %s68
    %s83 = sphi 0, %s69
    %s87 = sphi 0, %s87
    %s89 = sphi 0, %s87
    %s90 = sphi 0, %s89
    %s104 = sphi 0, %s90
    %s112 = sphi 0, %s114
    %s115 = sphi 0, %s112
    %s116 = sphi 0, %s115
    %s132 = sphi 0, %s116
    %s140 = sphi 0, %s142
    %s143 = sphi 0, %s140
    %s144 = sphi 0, %s143
    %s160 = sphi 0, %s144
    %s168 = sphi 0, %s170
    %s171 = sphi 0, %s168
    %s172 = sphi 0, %s171
    %s188 = sphi 0, %s172
    %s194 = sphi 0, %s196
    %s197 = sphi 0, %s194
    %s198 = sphi 0, %s197
    %s214 = sphi 0, %s198
    %s220 = sphi 0, %s222
    %s223 = sphi 0, %s220
    %s224 = sphi 0, %s223
    %s240 = sphi 0, %s224
  $region4: #{tpu_custom_call.1} parent=0 // loop_header_branch
    %16 = sbr.rel (%p14) target = $region8
  $region5: #{tpu_custom_call.1} parent=0 // loop_body
    %s18 = ssub.s32 %s13, 1
    %s19 = ssub.s32 %s13, 2
    %s29 = sadd.s32 1, %s22
    %p30 = scmp.ge.s32.totalorder %s29, 1
    %s31 = scalar_select %p30, 0, %s29
    %s32 = sadd.s32 1, %s21
    %s33 = scalar_select %p30, %s32, %s21
    %p34 = scmp.ge.s32.totalorder %s33, 4
    %s35 = scalar_select %p34, 0, %s33
    %s36 = sadd.s32 1, %s20
    %s37 = scalar_select %p34, %s36, %s20
    %p38 = scmp.ge.s32.totalorder %s37, 1
    %s39 = scalar_select %p38, 0, %s37
    %s40 = ssub.s32 %s20, %s39
    %p41 = scmp.eq.s32.totalorder %s40, 0
    %s43 = sadd.s32 %s42, 1
    %s44 = scalar_select %p41, %s42, %s43
    %p47 = pneg %p41
    %p48 = scmp.eq.s32.totalorder %s13, 3
    %p49 = por %p47, %p48
    %p50 = scmp.ne.s32.totalorder %s42, %s45
    %p51 = scmp.eq.s32.totalorder %s13, 0
    %p52 = por %p50, %p51
    %p53 = scmp.ne.s32.totalorder %s42, %s45
    %p54 = scmp.eq.s32.totalorder %s18, 3
    %p55 = por %p53, %p54
    %p56 = scmp.ne.s32.totalorder %s45, %s46
    %p57 = scmp.eq.s32.totalorder %s18, 0
    %p58 = por %p56, %p57
    %p59 = scmp.ne.s32.totalorder %s45, %s46
    %p60 = scmp.eq.s32.totalorder %s19, 3
    %p61 = por %p59, %p60
    %p63 = scmp.ne.s32.totalorder %s46, %s62
    %p64 = scmp.eq.s32.totalorder %s19, 0
    %p65 = por %p63, %p64
    %s67 = sadd.s32 %s66, 1
    %p70 = scmp.eq.s32.totalorder %s13, 3
    %p71 = scmp.ne.s32.totalorder %s66, %s68
    %p72 = scmp.eq.s32.totalorder %s13, 0
    %p73 = por %p71, %p72
    %p74 = scmp.ne.s32.totalorder %s66, %s68
    %p75 = scmp.eq.s32.totalorder %s18, 3
    %p76 = por %p74, %p75
    %p77 = scmp.ne.s32.totalorder %s68, %s69
    %p78 = scmp.eq.s32.totalorder %s18, 0
    %p79 = por %p77, %p78
    %p80 = scmp.ne.s32.totalorder %s68, %s69
    %p81 = scmp.eq.s32.totalorder %s19, 3
    %p82 = por %p80, %p81
    %p84 = scmp.ne.s32.totalorder %s69, %s83
    %p85 = scmp.eq.s32.totalorder %s19, 0
    %p86 = por %p84, %p85
    %s88 = sadd.s32 %s87, 1
    %p91 = scmp.eq.s32.totalorder %s13, 3
    %p92 = scmp.ne.s32.totalorder %s87, %s89
    %p93 = scmp.eq.s32.totalorder %s13, 0
    %p94 = por %p92, %p93
    %p95 = scmp.ne.s32.totalorder %s87, %s89
    %p96 = scmp.eq.s32.totalorder %s18, 3
    %p97 = por %p95, %p96
    %p98 = scmp.ne.s32.totalorder %s89, %s90
    %p99 = scmp.eq.s32.totalorder %s18, 0
    %p100 = por %p98, %p99
    %p101 = scmp.ne.s32.totalorder %s89, %s90
    %p102 = scmp.eq.s32.totalorder %s19, 3
    %p103 = por %p101, %p102
    %p105 = scmp.ne.s32.totalorder %s90, %s104
    %p106 = scmp.eq.s32.totalorder %s19, 0
    %p107 = por %p105, %p106
    %s108 = ssub.s32 %s21, %s35
    %s109 = ssub.s32 %s22, %s31
    %s110 = sor.u32 %s108, %s109
    %p111 = scmp.eq.s32.totalorder %s110, 0
    %s113 = sadd.s32 %s112, 1
    %s114 = scalar_select %p111, %s112, %s113
    %p117 = pneg %p111
    %p118 = scmp.eq.s32.totalorder %s13, 3
    %p119 = por %p117, %p118
    %p120 = scmp.ne.s32.totalorder %s112, %s115
    %p121 = scmp.eq.s32.totalorder %s13, 0
    %p122 = por %p120, %p121
    %p123 = scmp.ne.s32.totalorder %s112, %s115
    %p124 = scmp.eq.s32.totalorder %s18, 3
    %p125 = por %p123, %p124
    %p126 = scmp.ne.s32.totalorder %s115, %s116
    %p127 = scmp.eq.s32.totalorder %s18, 0
    %p128 = por %p126, %p127
    %p129 = scmp.ne.s32.totalorder %s115, %s116
    %p130 = scmp.eq.s32.totalorder %s19, 3
    %p131 = por %p129, %p130
    %p133 = scmp.ne.s32.totalorder %s116, %s132
    %p134 = scmp.eq.s32.totalorder %s19, 0
    %p135 = por %p133, %p134
    %s136 = ssub.s32 %s21, %s35
    %s137 = ssub.s32 %s22, %s31
    %s138 = sor.u32 %s136, %s137
    %p139 = scmp.eq.s32.totalorder %s138, 0
    %s141 = sadd.s32 %s140, 1
    %s142 = scalar_select %p139, %s140, %s141
    %p145 = pneg %p139
    %p146 = scmp.eq.s32.totalorder %s13, 3
    %p147 = por %p145, %p146
    %p148 = scmp.ne.s32.totalorder %s140, %s143
    %p149 = scmp.eq.s32.totalorder %s13, 0
    %p150 = por %p148, %p149
    %p151 = scmp.ne.s32.totalorder %s140, %s143
    %p152 = scmp.eq.s32.totalorder %s18, 3
    %p153 = por %p151, %p152
    %p154 = scmp.ne.s32.totalorder %s143, %s144
    %p155 = scmp.eq.s32.totalorder %s18, 0
    %p156 = por %p154, %p155
    %p157 = scmp.ne.s32.totalorder %s143, %s144
    %p158 = scmp.eq.s32.totalorder %s19, 3
    %p159 = por %p157, %p158
    %p161 = scmp.ne.s32.totalorder %s144, %s160
    %p162 = scmp.eq.s32.totalorder %s19, 0
    %p163 = por %p161, %p162
    %s164 = ssub.s32 %s21, %s35
    %s165 = ssub.s32 %s22, %s31
    %s166 = sor.u32 %s164, %s165
    %p167 = scmp.eq.s32.totalorder %s166, 0
    %s169 = sadd.s32 %s168, 1
    %s170 = scalar_select %p167, %s168, %s169
    %p173 = pneg %p167
    %p174 = scmp.eq.s32.totalorder %s13, 3
    %p175 = por %p173, %p174
    %p176 = scmp.ne.s32.totalorder %s168, %s171
    %p177 = scmp.eq.s32.totalorder %s13, 0
    %p178 = por %p176, %p177
    %p179 = scmp.ne.s32.totalorder %s168, %s171
    %p180 = scmp.eq.s32.totalorder %s18, 3
    %p181 = por %p179, %p180
    %p182 = scmp.ne.s32.totalorder %s171, %s172
    %p183 = scmp.eq.s32.totalorder %s18, 0
    %p184 = por %p182, %p183
    %p185 = scmp.ne.s32.totalorder %s171, %s172
    %p186 = scmp.eq.s32.totalorder %s19, 3
    %p187 = por %p185, %p186
    %p189 = scmp.ne.s32.totalorder %s172, %s188
    %p190 = scmp.eq.s32.totalorder %s19, 0
    %p191 = por %p189, %p190
    %s192 = ssub.s32 %s21, %s35
    %p193 = scmp.eq.s32.totalorder %s192, 0
    %s195 = sadd.s32 %s194, 1
    %s196 = scalar_select %p193, %s194, %s195
    %p199 = pneg %p193
    %p200 = scmp.eq.s32.totalorder %s13, 3
    %p201 = por %p199, %p200
    %p202 = scmp.ne.s32.totalorder %s194, %s197
    %p203 = scmp.eq.s32.totalorder %s13, 0
    %p204 = por %p202, %p203
    %p205 = scmp.ne.s32.totalorder %s194, %s197
    %p206 = scmp.eq.s32.totalorder %s18, 3
    %p207 = por %p205, %p206
    %p208 = scmp.ne.s32.totalorder %s197, %s198
    %p209 = scmp.eq.s32.totalorder %s18, 0
    %p210 = por %p208, %p209
    %p211 = scmp.ne.s32.totalorder %s197, %s198
    %p212 = scmp.eq.s32.totalorder %s19, 3
    %p213 = por %p211, %p212
    %p215 = scmp.ne.s32.totalorder %s198, %s214
    %p216 = scmp.eq.s32.totalorder %s19, 0
    %p217 = por %p215, %p216
    %s218 = ssub.s32 %s20, %s39
    %p219 = scmp.eq.s32.totalorder %s218, 0
    %s221 = sadd.s32 %s220, 1
    %s222 = scalar_select %p219, %s220, %s221
    %p225 = pneg %p219
    %p226 = scmp.eq.s32.totalorder %s13, 3
    %p227 = por %p225, %p226
    %p228 = scmp.ne.s32.totalorder %s220, %s223
    %p229 = scmp.eq.s32.totalorder %s13, 0
    %p230 = por %p228, %p229
    %p231 = scmp.ne.s32.totalorder %s220, %s223
    %p232 = scmp.eq.s32.totalorder %s18, 3
    %p233 = por %p231, %p232
    %p234 = scmp.ne.s32.totalorder %s223, %s224
    %p235 = scmp.eq.s32.totalorder %s18, 0
    %p236 = por %p234, %p235
    %p237 = scmp.ne.s32.totalorder %s223, %s224
    %p238 = scmp.eq.s32.totalorder %s19, 3
    %p239 = por %p237, %p238
    %p241 = scmp.ne.s32.totalorder %s224, %s240
    %p242 = scmp.eq.s32.totalorder %s19, 0
    %p243 = por %p241, %p242
    %p244 = scmp.le.s32.totalorder 1, %s13
    %p245 = scmp.lt.s32.totalorder %s13, 5
    %p246 = pnand %p244, %p245
    %p247 = pneg %p246
    // Predicated region
    $region9: #{tpu_custom_call.1} parent=5 // pred_check
      _
    $region10: #{tpu_custom_call.1} parent=5 // pred_check_branch
      %249 = sbr.rel (%p246) target = $region12
    $region11: #{tpu_custom_call.1} parent=5 // pred_region
      %s250 = ssub.s32 %s13, 1
      // Predicated region
      $region13: #{tpu_custom_call.1} parent=11 // pred_check
        %p251 = pneg %p58
      $region14: #{tpu_custom_call.1} parent=11 // pred_check_branch
        %253 = sbr.rel (%p251) target = $region16
      $region15: #{tpu_custom_call.1} parent=11 // pred_region
        %s254 = smul.u32 16, %s23
        %p255 = scmp.lt.s32.totalorder %s254, 15
        %s256 = scalar_select %p255, %s254, 15
        %s257 = smul.addr %s256, 8
        %s258 = scalar_lea.vmem %s0, %s257
        %s259 = smul.u32 16, %s23
      $region16: #{tpu_custom_call.1} parent=11 // pred_fallthru
        _
      // Predicated region
      $region17: #{tpu_custom_call.1} parent=11 // pred_check
        %p260 = pneg %p79
      $region18: #{tpu_custom_call.1} parent=11 // pred_check_branch
        %262 = sbr.rel (%p260) target = $region20
      $region19: #{tpu_custom_call.1} parent=11 // pred_region
        _
      $region20: #{tpu_custom_call.1} parent=11 // pred_fallthru
        _
      // Predicated region
      $region21: #{tpu_custom_call.1} parent=11 // pred_check
        %p263 = pneg %p100
      $region22: #{tpu_custom_call.1} parent=11 // pred_check_branch
        %265 = sbr.rel (%p263) target = $region24
      $region23: #{tpu_custom_call.1} parent=11 // pred_region
        _
      $region24: #{tpu_custom_call.1} parent=11 // pred_fallthru
        _
    $region12: #{tpu_custom_call.1} parent=5 // pred_fallthru
      _
    %p266 = scmp.lt.s32.totalorder %s13, 4
    // Predicated region
    $region25: #{tpu_custom_call.1} parent=5 // pred_check
      %p267 = pneg %p266
    $region26: #{tpu_custom_call.1} parent=5 // pred_check_branch
      %269 = sbr.rel (%p267) target = $region28
    $region27: #{tpu_custom_call.1} parent=5 // pred_region
      // Predicated region
      $region29: #{tpu_custom_call.1} parent=27 // pred_check
        %p270 = pneg %p122
      $region30: #{tpu_custom_call.1} parent=27 // pred_check_branch
        %272 = sbr.rel (%p270) target = $region32
      $region31: #{tpu_custom_call.1} parent=27 // pred_region
        %p273 = scmp.lt.s32.totalorder %s21, 3
        %s274 = scalar_select %p273, %s21, 3
        %p275 = scmp.lt.s32.totalorder %s22, 0
        %s276 = scalar_select %p275, %s22, 0
        %s277 = smul.addr %s274, 4
        %s278 = sadd.s32 %s276, %s277
        %s279 = smul.addr %s278, 8
        %s280 = scalar_lea.vmem %s3, %s279
      $region32: #{tpu_custom_call.1} parent=27 // pred_fallthru
        _
      // Predicated region
      $region33: #{tpu_custom_call.1} parent=27 // pred_check
        %p281 = pneg %p150
      $region34: #{tpu_custom_call.1} parent=27 // pred_check_branch
        %283 = sbr.rel (%p281) target = $region36
      $region35: #{tpu_custom_call.1} parent=27 // pred_region
        %p284 = scmp.lt.s32.totalorder %s21, 3
        %s285 = scalar_select %p284, %s21, 3
        %p286 = scmp.lt.s32.totalorder %s22, 0
        %s287 = scalar_select %p286, %s22, 0
        %s288 = sadd.s32 %s287, %s285
        %s289 = scalar_lea.vmem %s4, %s288
      $region36: #{tpu_custom_call.1} parent=27 // pred_fallthru
        _
      // Predicated region
      $region37: #{tpu_custom_call.1} parent=27 // pred_check
        %p290 = pneg %p178
      $region38: #{tpu_custom_call.1} parent=27 // pred_check_branch
        %292 = sbr.rel (%p290) target = $region40
      $region39: #{tpu_custom_call.1} parent=27 // pred_region
        %s293 = smul.u32 16, %s22
        %p294 = scmp.lt.s32.totalorder %s21, 3
        %s295 = scalar_select %p294, %s21, 3
        %p296 = scmp.lt.s32.totalorder %s293, 15
        %s297 = scalar_select %p296, %s293, 15
        %s298 = smul.addr %s295, 16
        %s299 = sadd.s32 %s297, %s298
        %s300 = smul.addr %s299, 8
        %s301 = scalar_lea.vmem %s5, %s300
        %s302 = smul.u32 16, %s22
      $region40: #{tpu_custom_call.1} parent=27 // pred_fallthru
        _
      // Predicated region
      $region41: #{tpu_custom_call.1} parent=27 // pred_check
        %p303 = pneg %p204
      $region42: #{tpu_custom_call.1} parent=27 // pred_check_branch
        %305 = sbr.rel (%p303) target = $region44
      $region43: #{tpu_custom_call.1} parent=27 // pred_region
        %p306 = scmp.lt.s32.totalorder %s21, 3
        %s307 = scalar_select %p306, %s21, 3
        %s308 = scalar_lea.vmem %s6, %s307
      $region44: #{tpu_custom_call.1} parent=27 // pred_fallthru
        _
    $region28: #{tpu_custom_call.1} parent=5 // pred_fallthru
      _
    %p309 = scmp.le.s32.totalorder 1, %s13
    %p310 = scmp.lt.s32.totalorder %s13, 5
    %p311 = pnand %p309, %p310
    %p312 = pneg %p311
    // Predicated region
    $region45: #{tpu_custom_call.1} parent=5 // pred_check
      _
    $region46: #{tpu_custom_call.1} parent=5 // pred_check_branch
      %314 = sbr.rel (%p311) target = $region48
    $region47: #{tpu_custom_call.1} parent=5 // pred_region
      %s315 = ssub.s32 %s13, 1
      %s316 = smul.u32 16, %s23
      %p317 = scmp.lt.s32.totalorder %s316, 15
      %s318 = scalar_select %p317, %s316, 15
      %s319 = smul.addr %s318, 8
      %s320 = scalar_lea.vmem %s0, %s319
      %p321 = pneg %p58
      %p322 = pneg %p55
      %p323 = pneg %p79
      %p324 = pneg %p76
      %p325 = pneg %p100
      %p326 = pneg %p97
      %p327 = scmp.lt.s32.totalorder %s24, 3
      %s328 = scalar_select %p327, %s24, 3
      %p329 = scmp.lt.s32.totalorder %s25, 0
      %s330 = scalar_select %p329, %s25, 0
      %s331 = smul.addr %s328, 4
      %s332 = sadd.s32 %s330, %s331
      %s333 = smul.addr %s332, 8
      %s334 = scalar_lea.vmem %s3, %s333
      %p335 = pneg %p128
      %p336 = pneg %p125
      %p337 = scmp.lt.s32.totalorder %s24, 3
      %s338 = scalar_select %p337, %s24, 3
      %p339 = scmp.lt.s32.totalorder %s25, 0
      %s340 = scalar_select %p339, %s25, 0
      %s341 = sadd.s32 %s340, %s338
      %s342 = scalar_lea.vmem %s4, %s341
      %p343 = pneg %p156
      %p344 = pneg %p153
      %s345 = smul.u32 16, %s25
      %p346 = scmp.lt.s32.totalorder %s24, 3
      %s347 = scalar_select %p346, %s24, 3
      %p348 = scmp.lt.s32.totalorder %s345, 15
      %s349 = scalar_select %p348, %s345, 15
      %s350 = smul.addr %s347, 16
      %s351 = sadd.s32 %s349, %s350
      %s352 = smul.addr %s351, 8
      %s353 = scalar_lea.vmem %s5, %s352
      %p354 = pneg %p184
      %p355 = pneg %p181
      %p356 = scmp.lt.s32.totalorder %s24, 3
      %s357 = scalar_select %p356, %s24, 3
      %s358 = scalar_lea.vmem %s6, %s357
      %p359 = pneg %p210
      %p360 = pneg %p207
      %p361 = pneg %p236
      %p362 = pneg %p233
      %s363 = smul.u32 16, %s23
      %p364 = scmp.lt.s32.totalorder %s363, 15
      %s365 = scalar_select %p364, %s363, 15
      %s366 = smul.addr %s365, 8
      %s367 = scalar_lea.vmem %s7, %s366
      %s368 = smul.u32 16, %s23
      %p369 = scmp.lt.s32.totalorder %s368, 15
      %s370 = scalar_select %p369, %s368, 15
      %s371 = smul.addr %s370, 8
      %s372 = scalar_lea.vmem %s0, %s371
      %s373 = smul.u32 16, %s23
      %p374 = scmp.lt.s32.totalorder %s24, 3
      %s375 = scalar_select %p374, %s24, 3
      %p376 = scmp.lt.s32.totalorder %s25, 0
      %s377 = scalar_select %p376, %s25, 0
      %s378 = smul.addr %s375, 4
      %s379 = sadd.s32 %s377, %s378
      %s380 = smul.addr %s379, 8
      %s381 = scalar_lea.vmem %s3, %s380
      %p382 = scmp.lt.s32.totalorder %s24, 3
      %s383 = scalar_select %p382, %s24, 3
      %p384 = scmp.lt.s32.totalorder %s25, 0
      %s385 = scalar_select %p384, %s25, 0
      %s386 = sadd.s32 %s385, %s383
      %s387 = scalar_lea.vmem %s4, %s386
      %s388 = smul.u32 16, %s25
      %p389 = scmp.lt.s32.totalorder %s24, 3
      %s390 = scalar_select %p389, %s24, 3
      %p391 = scmp.lt.s32.totalorder %s388, 15
      %s392 = scalar_select %p391, %s388, 15
      %s393 = smul.addr %s390, 16
      %s394 = sadd.s32 %s392, %s393
      %s395 = smul.addr %s394, 8
      %s396 = scalar_lea.vmem %s5, %s395
      %s397 = smul.u32 16, %s25
      %p398 = scmp.lt.s32.totalorder %s24, 3
      %s399 = scalar_select %p398, %s24, 3
      %s400 = scalar_lea.vmem %s6, %s399
      %s401 = smul.u32 16, %s23
      %p402 = scmp.lt.s32.totalorder %s401, 15
      %s403 = scalar_select %p402, %s401, 15
      %s404 = smul.addr %s403, 8
      %s405 = scalar_lea.vmem %s7, %s404
      %s406 = smul.u32 16, %s23
      %p407 = scmp.eq.s32.totalorder %s24, 0
      %p408 = scmp.eq.s32.totalorder %s25, 0
      %p409 = pnand %p407, %p408
      %p410 = pneg %p409
      // Predicated region
      $region49: #{tpu_custom_call.1} parent=47 // pred_check
        _
      $region50: #{tpu_custom_call.1} parent=47 // pred_check_branch
        %412 = sbr.rel (%p409) target = $region52
      $region51: #{tpu_custom_call.1} parent=47 // pred_region
        %v413 = vld [vmem:[%s372] sm:$0xff]
        %v414 = vld [vmem:[%s372 + $0x8] sm:$0xff]
        %v415 = vld [vmem:[%s372 + $0x10] sm:$0xff]
        %v416 = vld [vmem:[%s372 + $0x18] sm:$0xff]
        %v417 = vld [vmem:[%s372 + $0x20] sm:$0xff]
        %v418 = vld [vmem:[%s372 + $0x28] sm:$0xff]
        %v419 = vld [vmem:[%s372 + $0x30] sm:$0xff]
        %v420 = vld [vmem:[%s372 + $0x38] sm:$0xff]
        %v421 = vld [vmem:[%s372 + $0x40] sm:$0xff]
        %v422 = vld [vmem:[%s372 + $0x48] sm:$0xff]
        %v423 = vld [vmem:[%s372 + $0x50] sm:$0xff]
        %v424 = vld [vmem:[%s372 + $0x58] sm:$0xff]
        %v425 = vld [vmem:[%s372 + $0x60] sm:$0xff]
        %v426 = vld [vmem:[%s372 + $0x68] sm:$0xff]
        %v427 = vld [vmem:[%s372 + $0x70] sm:$0xff]
        %v428 = vld [vmem:[%s372 + $0x78] sm:$0xff]
        %vm429 = vcmask 261120
        %430 = vst.msk [vmem:[#allocation5] sm:$0xff] %vm429, %v413
        %431 = vst.msk [vmem:[#allocation5 + $0x8] sm:$0xff] %vm429, %v414
        %432 = vst.msk [vmem:[#allocation5 + $0x10] sm:$0xff] %vm429, %v415
        %433 = vst.msk [vmem:[#allocation5 + $0x18] sm:$0xff] %vm429, %v416
        %434 = vst.msk [vmem:[#allocation5 + $0x20] sm:$0xff] %vm429, %v417
        %435 = vst.msk [vmem:[#allocation5 + $0x28] sm:$0xff] %vm429, %v418
        %436 = vst.msk [vmem:[#allocation5 + $0x30] sm:$0xff] %vm429, %v419
        %437 = vst.msk [vmem:[#allocation5 + $0x38] sm:$0xff] %vm429, %v420
        %438 = vst.msk [vmem:[#allocation5 + $0x40] sm:$0xff] %vm429, %v421
        %439 = vst.msk [vmem:[#allocation5 + $0x48] sm:$0xff] %vm429, %v422
        %440 = vst.msk [vmem:[#allocation5 + $0x50] sm:$0xff] %vm429, %v423
        %441 = vst.msk [vmem:[#allocation5 + $0x58] sm:$0xff] %vm429, %v424
        %442 = vst.msk [vmem:[#allocation5 + $0x60] sm:$0xff] %vm429, %v425
        %443 = vst.msk [vmem:[#allocation5 + $0x68] sm:$0xff] %vm429, %v426
        %444 = vst.msk [vmem:[#allocation5 + $0x70] sm:$0xff] %vm429, %v427
        %445 = vst.msk [vmem:[#allocation5 + $0x78] sm:$0xff] %vm429, %v428
        %v446 = vld [vmem:[%s1] sm:$0xff]
        %v447 = vld [vmem:[%s1 + $0x8] sm:$0xff]
        %v448 = vld [vmem:[%s1 + $0x10] sm:$0xff]
        %v449 = vld [vmem:[%s1 + $0x18] sm:$0xff]
        %v450 = vld [vmem:[%s2] sm:$0x1]
        %v452 = vlaneseq
        %v453 = vshrl.u32 %v452, 7
        %v454 = vsub.s32 0, %v453
        %v455 = vrot.slane %v450, %v454
        %v458 = vsel %vm429, %v413, 0
        %v461 = vsel %vm429, %v414, 0
        %v464 = vsel %vm429, %v415, 0
        %v467 = vsel %vm429, %v416, 0
        %v470 = vsel %vm429, %v417, 0
        %v473 = vsel %vm429, %v418, 0
        %v476 = vsel %vm429, %v419, 0
        %v479 = vsel %vm429, %v420, 0
        %v482 = vsel %vm429, %v421, 0
        %v485 = vsel %vm429, %v422, 0
        %v488 = vsel %vm429, %v423, 0
        %v491 = vsel %vm429, %v424, 0
        %v494 = vsel %vm429, %v425, 0
        %v497 = vsel %vm429, %v426, 0
        %v500 = vsel %vm429, %v427, 0
        %v503 = vsel %vm429, %v428, 0
        %505 = vmatprep.subr.mxu0 0.0
        %506 = vmatpush1.msra.mxu0 %v446
        %507 = vmatprep.subr.mxu0 0.0
        %508 = vmatpush1.msra.mxu0 %v447
        %509 = vmatprep.subr.mxu0 0.0
        %510 = vmatpush1.msra.mxu0 %v448
        %511 = vmatprep.subr.mxu0 0.0
        %512 = vmatpush1.msra.mxu0 %v449
        %513 = vmatprep.subr.mxu0 0.0
        %514 = vmatpush1.msra.mxu0 0.0
        %515 = vmatprep.subr.mxu0 0.0
        %516 = vmatpush1.msra.mxu0 0.0
        %517 = vmatprep.subr.mxu0 0.0
        %518 = vmatpush1.msra.mxu0 0.0
        %519 = vmatprep.subr.mxu0 0.0
        %520 = vmatpush1.msra.mxu0 0.0
        %521 = vmatprep.subr.mxu0 0.0
        %522 = vmatpush1.msra.mxu0 0.0
        %523 = vmatprep.subr.mxu0 0.0
        %524 = vmatpush1.msra.mxu0 0.0
        %525 = vmatprep.subr.mxu0 0.0
        %526 = vmatpush1.msra.mxu0 0.0
        %527 = vmatprep.subr.mxu0 0.0
        %528 = vmatpush1.msra.mxu0 0.0
        %529 = vmatprep.subr.mxu0 0.0
        %530 = vmatpush1.msra.mxu0 0.0
        %531 = vmatprep.subr.mxu0 0.0
        %532 = vmatpush1.msra.mxu0 0.0
        %533 = vmatprep.subr.mxu0 0.0
        %534 = vmatpush1.msra.mxu0 0.0
        %535 = vmatprep.subr.mxu0 0.0
        %536 = vmatpush1.msra.mxu0 0.0
        %537 = vmatprep.subr.mxu0 0.0
        %538 = vmatpush1.msra.mxu0 0.0
        %539 = vmatprep.subr.mxu0 0.0
        %540 = vmatpush1.msra.mxu0 0.0
        %541 = vmatprep.subr.mxu0 0.0
        %542 = vmatpush1.msra.mxu0 0.0
        %543 = vmatprep.subr.mxu0 0.0
        %544 = vmatpush1.msra.mxu0 0.0
        %545 = vmatprep.subr.mxu0 0.0
        %546 = vmatpush1.msra.mxu0 0.0
        %547 = vmatprep.subr.mxu0 0.0
        %548 = vmatpush1.msra.mxu0 0.0
        %549 = vmatprep.subr.mxu0 0.0
        %550 = vmatpush1.msra.mxu0 0.0
        %551 = vmatprep.subr.mxu0 0.0
        %552 = vmatpush1.msra.mxu0 0.0
        %553 = vmatprep.subr.mxu0 0.0
        %554 = vmatpush1.msra.mxu0 0.0
        %555 = vmatprep.subr.mxu0 0.0
        %556 = vmatpush1.msra.mxu0 0.0
        %557 = vmatprep.subr.mxu0 0.0
        %558 = vmatpush1.msra.mxu0 0.0
        %559 = vmatprep.subr.mxu0 0.0
        %560 = vmatpush1.msra.mxu0 0.0
        %561 = vmatprep.subr.mxu0 0.0
        %562 = vmatpush1.msra.mxu0 0.0
        %563 = vmatprep.subr.mxu0 0.0
        %564 = vmatpush1.msra.mxu0 0.0
        %565 = vmatprep.subr.mxu0 0.0
        %566 = vmatpush1.msra.mxu0 0.0
        %567 = vmatprep.subr.mxu0 0.0
        %568 = vmatpush1.msra.mxu0 0.0
        %569 = vmatprep.mubr.f32.mxu0 0.0
        %570 = vmatmul.mubr.f32.gmra.mrb[0].mxu0 %v458
        %v571 = vpop.f32.mrb[0].mxu0
        %v572 = vadd.f32 %v455, %v571
        %v573 = vpop.f32.mrb[0].mxu0
        %574 = vmatprep.mubr.f32.mxu0 0.0
        %575 = vmatmul.mubr.f32.gmra.mrb[0].mxu0 %v461
        %v576 = vpop.f32.mrb[0].mxu0
        %v577 = vadd.f32 %v455, %v576
        %v578 = vpop.f32.mrb[0].mxu0
        %579 = vmatprep.mubr.f32.mxu0 0.0
        %580 = vmatmul.mubr.f32.gmra.mrb[0].mxu0 %v464
        %v581 = vpop.f32.mrb[0].mxu0
        %v582 = vadd.f32 %v455, %v581
        %v583 = vpop.f32.mrb[0].mxu0
        %584 = vmatprep.mubr.f32.mxu0 0.0
        %585 = vmatmul.mubr.f32.gmra.mrb[0].mxu0 %v467
        %v586 = vpop.f32.mrb[0].mxu0
        %v587 = vadd.f32 %v455, %v586
        %v588 = vpop.f32.mrb[0].mxu0
        %589 = vmatprep.mubr.f32.mxu0 0.0
        %590 = vmatmul.mubr.f32.gmra.mrb[0].mxu0 %v470
        %v591 = vpop.f32.mrb[0].mxu0
        %v592 = vadd.f32 %v455, %v591
        %v593 = vpop.f32.mrb[0].mxu0
        %594 = vmatprep.mubr.f32.mxu0 0.0
        %595 = vmatmul.mubr.f32.gmra.mrb[0].mxu0 %v473
        %v596 = vpop.f32.mrb[0].mxu0
        %v597 = vadd.f32 %v455, %v596
        %v598 = vpop.f32.mrb[0].mxu0
        %599 = vmatprep.mubr.f32.mxu0 0.0
        %600 = vmatmul.mubr.f32.gmra.mrb[0].mxu0 %v476
        %v601 = vpop.f32.mrb[0].mxu0
        %v602 = vadd.f32 %v455, %v601
        %v603 = vpop.f32.mrb[0].mxu0
        %604 = vmatprep.mubr.f32.mxu0 0.0
        %605 = vmatmul.mubr.f32.gmra.mrb[0].mxu0 %v479
        %v606 = vpop.f32.mrb[0].mxu0
        %v607 = vadd.f32 %v455, %v606
        %v608 = vpop.f32.mrb[0].mxu0
        %609 = vmatprep.mubr.f32.mxu0 0.0
        %610 = vmatmul.mubr.f32.gmra.mrb[0].mxu0 %v482
        %v611 = vpop.f32.mrb[0].mxu0
        %v612 = vadd.f32 %v455, %v611
        %v613 = vpop.f32.mrb[0].mxu0
        %614 = vmatprep.mubr.f32.mxu0 0.0
        %615 = vmatmul.mubr.f32.gmra.mrb[0].mxu0 %v485
        %v616 = vpop.f32.mrb[0].mxu0
        %v617 = vadd.f32 %v455, %v616
        %v618 = vpop.f32.mrb[0].mxu0
        %619 = vmatprep.mubr.f32.mxu0 0.0
        %620 = vmatmul.mubr.f32.gmra.mrb[0].mxu0 %v488
        %v621 = vpop.f32.mrb[0].mxu0
        %v622 = vadd.f32 %v455, %v621
        %v623 = vpop.f32.mrb[0].mxu0
        %624 = vmatprep.mubr.f32.mxu0 0.0
        %625 = vmatmul.mubr.f32.gmra.mrb[0].mxu0 %v491
        %v626 = vpop.f32.mrb[0].mxu0
        %v627 = vadd.f32 %v455, %v626
        %v628 = vpop.f32.mrb[0].mxu0
        %629 = vmatprep.mubr.f32.mxu0 0.0
        %630 = vmatmul.mubr.f32.gmra.mrb[0].mxu0 %v494
        %v631 = vpop.f32.mrb[0].mxu0
        %v632 = vadd.f32 %v455, %v631
        %v633 = vpop.f32.mrb[0].mxu0
        %634 = vmatprep.mubr.f32.mxu0 0.0
        %635 = vmatmul.mubr.f32.gmra.mrb[0].mxu0 %v497
        %v636 = vpop.f32.mrb[0].mxu0
        %v637 = vadd.f32 %v455, %v636
        %v638 = vpop.f32.mrb[0].mxu0
        %639 = vmatprep.mubr.f32.mxu0 0.0
        %640 = vmatmul.mubr.f32.gmra.mrb[0].mxu0 %v500
        %v641 = vpop.f32.mrb[0].mxu0
        %v642 = vadd.f32 %v455, %v641
        %v643 = vpop.f32.mrb[0].mxu0
        %644 = vmatprep.mubr.f32.mxu0 0.0
        %645 = vmatmul.mubr.f32.gmra.mrb[0].mxu0 %v503
        %v646 = vpop.f32.mrb[0].mxu0
        %v647 = vadd.f32 %v455, %v646
        %v648 = vpop.f32.mrb[0].mxu0
        %649 = vdwg.mxu0
        %vm650 = vcmask 31744
        %v651 = vsel %vm650, %v572, -inf
        %652 = vmax.xlane.f32.xlu0 %v651
        %v653 = vpop.xlane.xlu0 %652
        %v654 = vsel %vm650, %v577, -inf
        %655 = vmax.xlane.f32.xlu0 %v654
        %v656 = vpop.xlane.xlu0 %655
        %v657 = vsel %vm650, %v582, -inf
        %658 = vmax.xlane.f32.xlu0 %v657
        %v659 = vpop.xlane.xlu0 %658
        %v660 = vsel %vm650, %v587, -inf
        %661 = vmax.xlane.f32.xlu0 %v660
        %v662 = vpop.xlane.xlu0 %661
        %v663 = vsel %vm650, %v592, -inf
        %664 = vmax.xlane.f32.xlu0 %v663
        %v665 = vpop.xlane.xlu0 %664
        %v666 = vsel %vm650, %v597, -inf
        %667 = vmax.xlane.f32.xlu0 %v666
        %v668 = vpop.xlane.xlu0 %667
        %v669 = vsel %vm650, %v602, -inf
        %670 = vmax.xlane.f32.xlu0 %v669
        %v671 = vpop.xlane.xlu0 %670
        %v672 = vsel %vm650, %v607, -inf
        %673 = vmax.xlane.f32.xlu0 %v672
        %v674 = vpop.xlane.xlu0 %673
        %v675 = vsel %vm650, %v612, -inf
        %676 = vmax.xlane.f32.xlu0 %v675
        %v677 = vpop.xlane.xlu0 %676
        %v678 = vsel %vm650, %v617, -inf
        %679 = vmax.xlane.f32.xlu0 %v678
        %v680 = vpop.xlane.xlu0 %679
        %v681 = vsel %vm650, %v622, -inf
        %682 = vmax.xlane.f32.xlu0 %v681
        %v683 = vpop.xlane.xlu0 %682
        %v684 = vsel %vm650, %v627, -inf
        %685 = vmax.xlane.f32.xlu0 %v684
        %v686 = vpop.xlane.xlu0 %685
        %v687 = vsel %vm650, %v632, -inf
        %688 = vmax.xlane.f32.xlu0 %v687
        %v689 = vpop.xlane.xlu0 %688
        %v690 = vsel %vm650, %v637, -inf
        %691 = vmax.xlane.f32.xlu0 %v690
        %v692 = vpop.xlane.xlu0 %691
        %v693 = vsel %vm650, %v642, -inf
        %694 = vmax.xlane.f32.xlu0 %v693
        %v695 = vpop.xlane.xlu0 %694
        %v696 = vsel %vm650, %v647, -inf
        %697 = vmax.xlane.f32.xlu0 %v696
        %v698 = vpop.xlane.xlu0 %697
        %v699 = vsub.f32 %v572, %v653
        %v700 = vsub.f32 %v577, %v656
        %v701 = vsub.f32 %v582, %v659
        %v702 = vsub.f32 %v587, %v662
        %v703 = vsub.f32 %v592, %v665
        %v704 = vsub.f32 %v597, %v668
        %v705 = vsub.f32 %v602, %v671
        %v706 = vsub.f32 %v607, %v674
        %v707 = vsub.f32 %v612, %v677
        %v708 = vsub.f32 %v617, %v680
        %v709 = vsub.f32 %v622, %v683
        %v710 = vsub.f32 %v627, %v686
        %v711 = vsub.f32 %v632, %v689
        %v712 = vsub.f32 %v637, %v692
        %v713 = vsub.f32 %v642, %v695
        %v714 = vsub.f32 %v647, %v698
        %v715 = vmul.f32 %v699, 1.442695
        %v716 = vpow.pop %v715
        %v717 = vmul.f32 %v700, 1.442695
        %v718 = vpow.pop %v717
        %v719 = vmul.f32 %v701, 1.442695
        %v720 = vpow.pop %v719
        %v721 = vmul.f32 %v702, 1.442695
        %v722 = vpow.pop %v721
        %v723 = vmul.f32 %v703, 1.442695
        %v724 = vpow.pop %v723
        %v725 = vmul.f32 %v704, 1.442695
        %v726 = vpow.pop %v725
        %v727 = vmul.f32 %v705, 1.442695
        %v728 = vpow.pop %v727
        %v729 = vmul.f32 %v706, 1.442695
        %v730 = vpow.pop %v729
        %v731 = vmul.f32 %v707, 1.442695
        %v732 = vpow.pop %v731
        %v733 = vmul.f32 %v708, 1.442695
        %v734 = vpow.pop %v733
        %v735 = vmul.f32 %v709, 1.442695
        %v736 = vpow.pop %v735
        %v737 = vmul.f32 %v710, 1.442695
        %v738 = vpow.pop %v737
        %v739 = vmul.f32 %v711, 1.442695
        %v740 = vpow.pop %v739
        %v741 = vmul.f32 %v712, 1.442695
        %v742 = vpow.pop %v741
        %v743 = vmul.f32 %v713, 1.442695
        %v744 = vpow.pop %v743
        %v745 = vmul.f32 %v714, 1.442695
        %v746 = vpow.pop %v745
        %v747 = vsel %vm650, %v716, 0.0
        %748 = vadd.xlane.f32.xlu0 %v747
        %v749 = vpop.xlane.xlu0 %748
        %v750 = vsel %vm650, %v718, 0.0
        %751 = vadd.xlane.f32.xlu0 %v750
        %v752 = vpop.xlane.xlu0 %751
        %v753 = vsel %vm650, %v720, 0.0
        %754 = vadd.xlane.f32.xlu0 %v753
        %v755 = vpop.xlane.xlu0 %754
        %v756 = vsel %vm650, %v722, 0.0
        %757 = vadd.xlane.f32.xlu0 %v756
        %v758 = vpop.xlane.xlu0 %757
        %v759 = vsel %vm650, %v724, 0.0
        %760 = vadd.xlane.f32.xlu0 %v759
        %v761 = vpop.xlane.xlu0 %760
        %v762 = vsel %vm650, %v726, 0.0
        %763 = vadd.xlane.f32.xlu0 %v762
        %v764 = vpop.xlane.xlu0 %763
        %v765 = vsel %vm650, %v728, 0.0
        %766 = vadd.xlane.f32.xlu0 %v765
        %v767 = vpop.xlane.xlu0 %766
        %v768 = vsel %vm650, %v730, 0.0
        %769 = vadd.xlane.f32.xlu0 %v768
        %v770 = vpop.xlane.xlu0 %769
        %v771 = vsel %vm650, %v732, 0.0
        %772 = vadd.xlane.f32.xlu0 %v771
        %v773 = vpop.xlane.xlu0 %772
        %v774 = vsel %vm650, %v734, 0.0
        %775 = vadd.xlane.f32.xlu0 %v774
        %v776 = vpop.xlane.xlu0 %775
        %v777 = vsel %vm650, %v736, 0.0
        %778 = vadd.xlane.f32.xlu0 %v777
        %v779 = vpop.xlane.xlu0 %778
        %v780 = vsel %vm650, %v738, 0.0
        %781 = vadd.xlane.f32.xlu0 %v780
        %v782 = vpop.xlane.xlu0 %781
        %v783 = vsel %vm650, %v740, 0.0
        %784 = vadd.xlane.f32.xlu0 %v783
        %v785 = vpop.xlane.xlu0 %784
        %v786 = vsel %vm650, %v742, 0.0
        %787 = vadd.xlane.f32.xlu0 %v786
        %v788 = vpop.xlane.xlu0 %787
        %v789 = vsel %vm650, %v744, 0.0
        %790 = vadd.xlane.f32.xlu0 %v789
        %v791 = vpop.xlane.xlu0 %790
        %v792 = vsel %vm650, %v746, 0.0
        %793 = vadd.xlane.f32.xlu0 %v792
        %v794 = vpop.xlane.xlu0 %793
        %v795 = vrcp.pop %v749
        %v796 = vmul.f32 %v716, %v795
        %v797 = vrcp.pop %v752
        %v798 = vmul.f32 %v718, %v797
        %v799 = vrcp.pop %v755
        %v800 = vmul.f32 %v720, %v799
        %v801 = vrcp.pop %v758
        %v802 = vmul.f32 %v722, %v801
        %v803 = vrcp.pop %v761
        %v804 = vmul.f32 %v724, %v803
        %v805 = vrcp.pop %v764
        %v806 = vmul.f32 %v726, %v805
        %v807 = vrcp.pop %v767
        %v808 = vmul.f32 %v728, %v807
        %v809 = vrcp.pop %v770
        %v810 = vmul.f32 %v730, %v809
        %v811 = vrcp.pop %v773
        %v812 = vmul.f32 %v732, %v811
        %v813 = vrcp.pop %v776
        %v814 = vmul.f32 %v734, %v813
        %v815 = vrcp.pop %v779
        %v816 = vmul.f32 %v736, %v815
        %v817 = vrcp.pop %v782
        %v818 = vmul.f32 %v738, %v817
        %v819 = vrcp.pop %v785
        %v820 = vmul.f32 %v740, %v819
        %v821 = vrcp.pop %v788
        %v822 = vmul.f32 %v742, %v821
        %v823 = vrcp.pop %v791
        %v824 = vmul.f32 %v744, %v823
        %v825 = vrcp.pop %v794
        %v826 = vmul.f32 %v746, %v825
        %v827 = vlaneseq
        %v828 = vand.u32 %v827, 127
        %v829 = vsel %vm650, %v796, -inf
        %830 = vmax.xlane.f32.xlu0 %v829
        %v831 = vpop.xlane.xlu0 %830
        %v832 = vsel %vm650, %v798, -inf
        %833 = vmax.xlane.f32.xlu0 %v832
        %v834 = vpop.xlane.xlu0 %833
        %v835 = vsel %vm650, %v800, -inf
        %836 = vmax.xlane.f32.xlu0 %v835
        %v837 = vpop.xlane.xlu0 %836
        %v838 = vsel %vm650, %v802, -inf
        %839 = vmax.xlane.f32.xlu0 %v838
        %v840 = vpop.xlane.xlu0 %839
        %v841 = vsel %vm650, %v804, -inf
        %842 = vmax.xlane.f32.xlu0 %v841
        %v843 = vpop.xlane.xlu0 %842
        %v844 = vsel %vm650, %v806, -inf
        %845 = vmax.xlane.f32.xlu0 %v844
        %v846 = vpop.xlane.xlu0 %845
        %v847 = vsel %vm650, %v808, -inf
        %848 = vmax.xlane.f32.xlu0 %v847
        %v849 = vpop.xlane.xlu0 %848
        %v850 = vsel %vm650, %v810, -inf
        %851 = vmax.xlane.f32.xlu0 %v850
        %v852 = vpop.xlane.xlu0 %851
        %v853 = vsel %vm650, %v812, -inf
        %854 = vmax.xlane.f32.xlu0 %v853
        %v855 = vpop.xlane.xlu0 %854
        %v856 = vsel %vm650, %v814, -inf
        %857 = vmax.xlane.f32.xlu0 %v856
        %v858 = vpop.xlane.xlu0 %857
        %v859 = vsel %vm650, %v816, -inf
        %860 = vmax.xlane.f32.xlu0 %v859
        %v861 = vpop.xlane.xlu0 %860
        %v862 = vsel %vm650, %v818, -inf
        %863 = vmax.xlane.f32.xlu0 %v862
        %v864 = vpop.xlane.xlu0 %863
        %v865 = vsel %vm650, %v820, -inf
        %866 = vmax.xlane.f32.xlu0 %v865
        %v867 = vpop.xlane.xlu0 %866
        %v868 = vsel %vm650, %v822, -inf
        %869 = vmax.xlane.f32.xlu0 %v868
        %v870 = vpop.xlane.xlu0 %869
        %v871 = vsel %vm650, %v824, -inf
        %872 = vmax.xlane.f32.xlu0 %v871
        %v873 = vpop.xlane.xlu0 %872
        %v874 = vsel %vm650, %v826, -inf
        %875 = vmax.xlane.f32.xlu0 %v874
        %v876 = vpop.xlane.xlu0 %875
        %vm877 = vcmp.eq.f32.partialorder %v796, %v831
        %vm878 = vcmp.eq.f32.partialorder %v798, %v834
        %vm879 = vcmp.eq.f32.partialorder %v800, %v837
        %vm880 = vcmp.eq.f32.partialorder %v802, %v840
        %vm881 = vcmp.eq.f32.partialorder %v804, %v843
        %vm882 = vcmp.eq.f32.partialorder %v806, %v846
        %vm883 = vcmp.eq.f32.partialorder %v808, %v849
        %vm884 = vcmp.eq.f32.partialorder %v810, %v852
        %vm885 = vcmp.eq.f32.partialorder %v812, %v855
        %vm886 = vcmp.eq.f32.partialorder %v814, %v858
        %vm887 = vcmp.eq.f32.partialorder %v816, %v861
        %vm888 = vcmp.eq.f32.partialorder %v818, %v864
        %vm889 = vcmp.eq.f32.partialorder %v820, %v867
        %vm890 = vcmp.eq.f32.partialorder %v822, %v870
        %vm891 = vcmp.eq.f32.partialorder %v824, %v873
        %vm892 = vcmp.eq.f32.partialorder %v826, %v876
        %v893 = vsel %vm877, %v828, 4
        %v894 = vsel %vm878, %v828, 4
        %v895 = vsel %vm879, %v828, 4
        %v896 = vsel %vm880, %v828, 4
        %v897 = vsel %vm881, %v828, 4
        %v898 = vsel %vm882, %v828, 4
        %v899 = vsel %vm883, %v828, 4
        %v900 = vsel %vm884, %v828, 4
        %v901 = vsel %vm885, %v828, 4
        %v902 = vsel %vm886, %v828, 4
        %v903 = vsel %vm887, %v828, 4
        %v904 = vsel %vm888, %v828, 4
        %v905 = vsel %vm889, %v828, 4
        %v906 = vsel %vm890, %v828, 4
        %v907 = vsel %vm891, %v828, 4
        %v908 = vsel %vm892, %v828, 4
        %v909 = vsel %vm650, %v893, 2147483647
        %v910 = vand.u32 %v909, 65535
        %v911 = vshra.s32 %v909, 16
        %v912 = vcvt.s32.f32 %v910
        %v913 = vcvt.s32.f32 %v911
        %914 = vmin.xlane.f32.xlu0 %v913
        %v915 = vpop.xlane.xlu0 %914
        %vm916 = vcmp.eq.f32.partialorder %v913, %v915
        %v917 = vsel %vm916, %v912, inf
        %918 = vmin.xlane.f32.xlu0 %v917
        %v919 = vpop.xlane.xlu0 %918
        %v920 = vcvt.f32.s32 %v919
        %v921 = vcvt.f32.s32 %v915
        %v922 = vshll.u32 %v921, 16
        %v923 = vadd.s32 %v922, %v920
        %v924 = vsel %vm650, %v894, 2147483647
        %v925 = vand.u32 %v924, 65535
        %v926 = vshra.s32 %v924, 16
        %v927 = vcvt.s32.f32 %v925
        %v928 = vcvt.s32.f32 %v926
        %929 = vmin.xlane.f32.xlu0 %v928
        %v930 = vpop.xlane.xlu0 %929
        %vm931 = vcmp.eq.f32.partialorder %v928, %v930
        %v932 = vsel %vm931, %v927, inf
        %933 = vmin.xlane.f32.xlu0 %v932
        %v934 = vpop.xlane.xlu0 %933
        %v935 = vcvt.f32.s32 %v934
        %v936 = vcvt.f32.s32 %v930
        %v937 = vshll.u32 %v936, 16
        %v938 = vadd.s32 %v937, %v935
        %v939 = vsel %vm650, %v895, 2147483647
        %v940 = vand.u32 %v939, 65535
        %v941 = vshra.s32 %v939, 16
        %v942 = vcvt.s32.f32 %v940
        %v943 = vcvt.s32.f32 %v941
        %944 = vmin.xlane.f32.xlu0 %v943
        %v945 = vpop.xlane.xlu0 %944
        %vm946 = vcmp.eq.f32.partialorder %v943, %v945
        %v947 = vsel %vm946, %v942, inf
        %948 = vmin.xlane.f32.xlu0 %v947
        %v949 = vpop.xlane.xlu0 %948
        %v950 = vcvt.f32.s32 %v949
        %v951 = vcvt.f32.s32 %v945
        %v952 = vshll.u32 %v951, 16
        %v953 = vadd.s32 %v952, %v950
        %v954 = vsel %vm650, %v896, 2147483647
        %v955 = vand.u32 %v954, 65535
        %v956 = vshra.s32 %v954, 16
        %v957 = vcvt.s32.f32 %v955
        %v958 = vcvt.s32.f32 %v956
        %959 = vmin.xlane.f32.xlu0 %v958
        %v960 = vpop.xlane.xlu0 %959
        %vm961 = vcmp.eq.f32.partialorder %v958, %v960
        %v962 = vsel %vm961, %v957, inf
        %963 = vmin.xlane.f32.xlu0 %v962
        %v964 = vpop.xlane.xlu0 %963
        %v965 = vcvt.f32.s32 %v964
        %v966 = vcvt.f32.s32 %v960
        %v967 = vshll.u32 %v966, 16
        %v968 = vadd.s32 %v967, %v965
        %v969 = vsel %vm650, %v897, 2147483647
        %v970 = vand.u32 %v969, 65535
        %v971 = vshra.s32 %v969, 16
        %v972 = vcvt.s32.f32 %v970
        %v973 = vcvt.s32.f32 %v971
        %974 = vmin.xlane.f32.xlu0 %v973
        %v975 = vpop.xlane.xlu0 %974
        %vm976 = vcmp.eq.f32.partialorder %v973, %v975
        %v977 = vsel %vm976, %v972, inf
        %978 = vmin.xlane.f32.xlu0 %v977
        %v979 = vpop.xlane.xlu0 %978
        %v980 = vcvt.f32.s32 %v979
        %v981 = vcvt.f32.s32 %v975
        %v982 = vshll.u32 %v981, 16
        %v983 = vadd.s32 %v982, %v980
        %v984 = vsel %vm650, %v898, 2147483647
        %v985 = vand.u32 %v984, 65535
        %v986 = vshra.s32 %v984, 16
        %v987 = vcvt.s32.f32 %v985
        %v988 = vcvt.s32.f32 %v986
        %989 = vmin.xlane.f32.xlu0 %v988
        %v990 = vpop.xlane.xlu0 %989
        %vm991 = vcmp.eq.f32.partialorder %v988, %v990
        %v992 = vsel %vm991, %v987, inf
        %993 = vmin.xlane.f32.xlu0 %v992
        %v994 = vpop.xlane.xlu0 %993
        %v995 = vcvt.f32.s32 %v994
        %v996 = vcvt.f32.s32 %v990
        %v997 = vshll.u32 %v996, 16
        %v998 = vadd.s32 %v997, %v995
        %v999 = vsel %vm650, %v899, 2147483647
        %v1000 = vand.u32 %v999, 65535
        %v1001 = vshra.s32 %v999, 16
        %v1002 = vcvt.s32.f32 %v1000
        %v1003 = vcvt.s32.f32 %v1001
        %1004 = vmin.xlane.f32.xlu0 %v1003
        %v1005 = vpop.xlane.xlu0 %1004
        %vm1006 = vcmp.eq.f32.partialorder %v1003, %v1005
        %v1007 = vsel %vm1006, %v1002, inf
        %1008 = vmin.xlane.f32.xlu0 %v1007
        %v1009 = vpop.xlane.xlu0 %1008
        %v1010 = vcvt.f32.s32 %v1009
        %v1011 = vcvt.f32.s32 %v1005
        %v1012 = vshll.u32 %v1011, 16
        %v1013 = vadd.s32 %v1012, %v1010
        %v1014 = vsel %vm650, %v900, 2147483647
        %v1015 = vand.u32 %v1014, 65535
        %v1016 = vshra.s32 %v1014, 16
        %v1017 = vcvt.s32.f32 %v1015
        %v1018 = vcvt.s32.f32 %v1016
        %1019 = vmin.xlane.f32.xlu0 %v1018
        %v1020 = vpop.xlane.xlu0 %1019
        %vm1021 = vcmp.eq.f32.partialorder %v1018, %v1020
        %v1022 = vsel %vm1021, %v1017, inf
        %1023 = vmin.xlane.f32.xlu0 %v1022
        %v1024 = vpop.xlane.xlu0 %1023
        %v1025 = vcvt.f32.s32 %v1024
        %v1026 = vcvt.f32.s32 %v1020
        %v1027 = vshll.u32 %v1026, 16
        %v1028 = vadd.s32 %v1027, %v1025
        %v1029 = vsel %vm650, %v901, 2147483647
        %v1030 = vand.u32 %v1029, 65535
        %v1031 = vshra.s32 %v1029, 16
        %v1032 = vcvt.s32.f32 %v1030
        %v1033 = vcvt.s32.f32 %v1031
        %1034 = vmin.xlane.f32.xlu0 %v1033
        %v1035 = vpop.xlane.xlu0 %1034
        %vm1036 = vcmp.eq.f32.partialorder %v1033, %v1035
        %v1037 = vsel %vm1036, %v1032, inf
        %1038 = vmin.xlane.f32.xlu0 %v1037
        %v1039 = vpop.xlane.xlu0 %1038
        %v1040 = vcvt.f32.s32 %v1039
        %v1041 = vcvt.f32.s32 %v1035
        %v1042 = vshll.u32 %v1041, 16
        %v1043 = vadd.s32 %v1042, %v1040
        %v1044 = vsel %vm650, %v902, 2147483647
        %v1045 = vand.u32 %v1044, 65535
        %v1046 = vshra.s32 %v1044, 16
        %v1047 = vcvt.s32.f32 %v1045
        %v1048 = vcvt.s32.f32 %v1046
        %1049 = vmin.xlane.f32.xlu0 %v1048
        %v1050 = vpop.xlane.xlu0 %1049
        %vm1051 = vcmp.eq.f32.partialorder %v1048, %v1050
        %v1052 = vsel %vm1051, %v1047, inf
        %1053 = vmin.xlane.f32.xlu0 %v1052
        %v1054 = vpop.xlane.xlu0 %1053
        %v1055 = vcvt.f32.s32 %v1054
        %v1056 = vcvt.f32.s32 %v1050
        %v1057 = vshll.u32 %v1056, 16
        %v1058 = vadd.s32 %v1057, %v1055
        %v1059 = vsel %vm650, %v903, 2147483647
        %v1060 = vand.u32 %v1059, 65535
        %v1061 = vshra.s32 %v1059, 16
        %v1062 = vcvt.s32.f32 %v1060
        %v1063 = vcvt.s32.f32 %v1061
        %1064 = vmin.xlane.f32.xlu0 %v1063
        %v1065 = vpop.xlane.xlu0 %1064
        %vm1066 = vcmp.eq.f32.partialorder %v1063, %v1065
        %v1067 = vsel %vm1066, %v1062, inf
        %1068 = vmin.xlane.f32.xlu0 %v1067
        %v1069 = vpop.xlane.xlu0 %1068
        %v1070 = vcvt.f32.s32 %v1069
        %v1071 = vcvt.f32.s32 %v1065
        %v1072 = vshll.u32 %v1071, 16
        %v1073 = vadd.s32 %v1072, %v1070
        %v1074 = vsel %vm650, %v904, 2147483647
        %v1075 = vand.u32 %v1074, 65535
        %v1076 = vshra.s32 %v1074, 16
        %v1077 = vcvt.s32.f32 %v1075
        %v1078 = vcvt.s32.f32 %v1076
        %1079 = vmin.xlane.f32.xlu0 %v1078
        %v1080 = vpop.xlane.xlu0 %1079
        %vm1081 = vcmp.eq.f32.partialorder %v1078, %v1080
        %v1082 = vsel %vm1081, %v1077, inf
        %1083 = vmin.xlane.f32.xlu0 %v1082
        %v1084 = vpop.xlane.xlu0 %1083
        %v1085 = vcvt.f32.s32 %v1084
        %v1086 = vcvt.f32.s32 %v1080
        %v1087 = vshll.u32 %v1086, 16
        %v1088 = vadd.s32 %v1087, %v1085
        %v1089 = vsel %vm650, %v905, 2147483647
        %v1090 = vand.u32 %v1089, 65535
        %v1091 = vshra.s32 %v1089, 16
        %v1092 = vcvt.s32.f32 %v1090
        %v1093 = vcvt.s32.f32 %v1091
        %1094 = vmin.xlane.f32.xlu0 %v1093
        %v1095 = vpop.xlane.xlu0 %1094
        %vm1096 = vcmp.eq.f32.partialorder %v1093, %v1095
        %v1097 = vsel %vm1096, %v1092, inf
        %1098 = vmin.xlane.f32.xlu0 %v1097
        %v1099 = vpop.xlane.xlu0 %1098
        %v1100 = vcvt.f32.s32 %v1099
        %v1101 = vcvt.f32.s32 %v1095
        %v1102 = vshll.u32 %v1101, 16
        %v1103 = vadd.s32 %v1102, %v1100
        %v1104 = vsel %vm650, %v906, 2147483647
        %v1105 = vand.u32 %v1104, 65535
        %v1106 = vshra.s32 %v1104, 16
        %v1107 = vcvt.s32.f32 %v1105
        %v1108 = vcvt.s32.f32 %v1106
        %1109 = vmin.xlane.f32.xlu0 %v1108
        %v1110 = vpop.xlane.xlu0 %1109
        %vm1111 = vcmp.eq.f32.partialorder %v1108, %v1110
        %v1112 = vsel %vm1111, %v1107, inf
        %1113 = vmin.xlane.f32.xlu0 %v1112
        %v1114 = vpop.xlane.xlu0 %1113
        %v1115 = vcvt.f32.s32 %v1114
        %v1116 = vcvt.f32.s32 %v1110
        %v1117 = vshll.u32 %v1116, 16
        %v1118 = vadd.s32 %v1117, %v1115
        %v1119 = vsel %vm650, %v907, 2147483647
        %v1120 = vand.u32 %v1119, 65535
        %v1121 = vshra.s32 %v1119, 16
        %v1122 = vcvt.s32.f32 %v1120
        %v1123 = vcvt.s32.f32 %v1121
        %1124 = vmin.xlane.f32.xlu0 %v1123
        %v1125 = vpop.xlane.xlu0 %1124
        %vm1126 = vcmp.eq.f32.partialorder %v1123, %v1125
        %v1127 = vsel %vm1126, %v1122, inf
        %1128 = vmin.xlane.f32.xlu0 %v1127
        %v1129 = vpop.xlane.xlu0 %1128
        %v1130 = vcvt.f32.s32 %v1129
        %v1131 = vcvt.f32.s32 %v1125
        %v1132 = vshll.u32 %v1131, 16
        %v1133 = vadd.s32 %v1132, %v1130
        %v1134 = vsel %vm650, %v908, 2147483647
        %v1135 = vand.u32 %v1134, 65535
        %v1136 = vshra.s32 %v1134, 16
        %v1137 = vcvt.s32.f32 %v1135
        %v1138 = vcvt.s32.f32 %v1136
        %1139 = vmin.xlane.f32.xlu0 %v1138
        %v1140 = vpop.xlane.xlu0 %1139
        %vm1141 = vcmp.eq.f32.partialorder %v1138, %v1140
        %v1142 = vsel %vm1141, %v1137, inf
        %1143 = vmin.xlane.f32.xlu0 %v1142
        %v1144 = vpop.xlane.xlu0 %1143
        %v1145 = vcvt.f32.s32 %v1144
        %v1146 = vcvt.f32.s32 %v1140
        %v1147 = vshll.u32 %v1146, 16
        %v1148 = vadd.s32 %v1147, %v1145
        %vm1149 = vcmp.eq.s32.totalorder %v828, %v923
        %vm1150 = vcmp.eq.s32.totalorder %v828, %v938
        %vm1151 = vcmp.eq.s32.totalorder %v828, %v953
        %vm1152 = vcmp.eq.s32.totalorder %v828, %v968
        %vm1153 = vcmp.eq.s32.totalorder %v828, %v983
        %vm1154 = vcmp.eq.s32.totalorder %v828, %v998
        %vm1155 = vcmp.eq.s32.totalorder %v828, %v1013
        %vm1156 = vcmp.eq.s32.totalorder %v828, %v1028
        %vm1157 = vcmp.eq.s32.totalorder %v828, %v1043
        %vm1158 = vcmp.eq.s32.totalorder %v828, %v1058
        %vm1159 = vcmp.eq.s32.totalorder %v828, %v1073
        %vm1160 = vcmp.eq.s32.totalorder %v828, %v1088
        %vm1161 = vcmp.eq.s32.totalorder %v828, %v1103
        %vm1162 = vcmp.eq.s32.totalorder %v828, %v1118
        %vm1163 = vcmp.eq.s32.totalorder %v828, %v1133
        %vm1164 = vcmp.eq.s32.totalorder %v828, %v1148
        %v1165 = vsel %vm1149, %v796, 0.0
        %v1166 = vsel %vm1150, %v798, 0.0
        %v1167 = vsel %vm1151, %v800, 0.0
        %v1168 = vsel %vm1152, %v802, 0.0
        %v1169 = vsel %vm1153, %v804, 0.0
        %v1170 = vsel %vm1154, %v806, 0.0
        %v1171 = vsel %vm1155, %v808, 0.0
        %v1172 = vsel %vm1156, %v810, 0.0
        %v1173 = vsel %vm1157, %v812, 0.0
        %v1174 = vsel %vm1158, %v814, 0.0
        %v1175 = vsel %vm1159, %v816, 0.0
        %v1176 = vsel %vm1160, %v818, 0.0
        %v1177 = vsel %vm1161, %v820, 0.0
        %v1178 = vsel %vm1162, %v822, 0.0
        %v1179 = vsel %vm1163, %v824, 0.0
        %v1180 = vsel %vm1164, %v826, 0.0
        %v1181 = vadd.f32 %v1165, 0.0
        %v1182 = vadd.f32 %v1166, 0.0
        %v1183 = vadd.f32 %v1167, 0.0
        %v1184 = vadd.f32 %v1168, 0.0
        %v1185 = vadd.f32 %v1169, 0.0
        %v1186 = vadd.f32 %v1170, 0.0
        %v1187 = vadd.f32 %v1171, 0.0
        %v1188 = vadd.f32 %v1172, 0.0
        %v1189 = vadd.f32 %v1173, 0.0
        %v1190 = vadd.f32 %v1174, 0.0
        %v1191 = vadd.f32 %v1175, 0.0
        %v1192 = vadd.f32 %v1176, 0.0
        %v1193 = vadd.f32 %v1177, 0.0
        %v1194 = vadd.f32 %v1178, 0.0
        %v1195 = vadd.f32 %v1179, 0.0
        %v1196 = vadd.f32 %v1180, 0.0
        %v1197 = vsel %vm1149, -inf, %v796
        %v1198 = vsel %vm1150, -inf, %v798
        %v1199 = vsel %vm1151, -inf, %v800
        %v1200 = vsel %vm1152, -inf, %v802
        %v1201 = vsel %vm1153, -inf, %v804
        %v1202 = vsel %vm1154, -inf, %v806
        %v1203 = vsel %vm1155, -inf, %v808
        %v1204 = vsel %vm1156, -inf, %v810
        %v1205 = vsel %vm1157, -inf, %v812
        %v1206 = vsel %vm1158, -inf, %v814
        %v1207 = vsel %vm1159, -inf, %v816
        %v1208 = vsel %vm1160, -inf, %v818
        %v1209 = vsel %vm1161, -inf, %v820
        %v1210 = vsel %vm1162, -inf, %v822
        %v1211 = vsel %vm1163, -inf, %v824
        %v1212 = vsel %vm1164, -inf, %v826
        %v1213 = vsel %vm650, %v1197, -inf
        %1214 = vmax.xlane.f32.xlu0 %v1213
        %v1215 = vpop.xlane.xlu0 %1214
        %v1216 = vsel %vm650, %v1198, -inf
        %1217 = vmax.xlane.f32.xlu0 %v1216
        %v1218 = vpop.xlane.xlu0 %1217
        %v1219 = vsel %vm650, %v1199, -inf
        %1220 = vmax.xlane.f32.xlu0 %v1219
        %v1221 = vpop.xlane.xlu0 %1220
        %v1222 = vsel %vm650, %v1200, -inf
        %1223 = vmax.xlane.f32.xlu0 %v1222
        %v1224 = vpop.xlane.xlu0 %1223
        %v1225 = vsel %vm650, %v1201, -inf
        %1226 = vmax.xlane.f32.xlu0 %v1225
        %v1227 = vpop.xlane.xlu0 %1226
        %v1228 = vsel %vm650, %v1202, -inf
        %1229 = vmax.xlane.f32.xlu0 %v1228
        %v1230 = vpop.xlane.xlu0 %1229
        %v1231 = vsel %vm650, %v1203, -inf
        %1232 = vmax.xlane.f32.xlu0 %v1231
        %v1233 = vpop.xlane.xlu0 %1232
        %v1234 = vsel %vm650, %v1204, -inf
        %1235 = vmax.xlane.f32.xlu0 %v1234
        %v1236 = vpop.xlane.xlu0 %1235
        %v1237 = vsel %vm650, %v1205, -inf
        %1238 = vmax.xlane.f32.xlu0 %v1237
        %v1239 = vpop.xlane.xlu0 %1238
        %v1240 = vsel %vm650, %v1206, -inf
        %1241 = vmax.xlane.f32.xlu0 %v1240
        %v1242 = vpop.xlane.xlu0 %1241
        %v1243 = vsel %vm650, %v1207, -inf
        %1244 = vmax.xlane.f32.xlu0 %v1243
        %v1245 = vpop.xlane.xlu0 %1244
        %v1246 = vsel %vm650, %v1208, -inf
        %1247 = vmax.xlane.f32.xlu0 %v1246
        %v1248 = vpop.xlane.xlu0 %1247
        %v1249 = vsel %vm650, %v1209, -inf
        %1250 = vmax.xlane.f32.xlu0 %v1249
        %v1251 = vpop.xlane.xlu0 %1250
        %v1252 = vsel %vm650, %v1210, -inf
        %1253 = vmax.xlane.f32.xlu0 %v1252
        %v1254 = vpop.xlane.xlu0 %1253
        %v1255 = vsel %vm650, %v1211, -inf
        %1256 = vmax.xlane.f32.xlu0 %v1255
        %v1257 = vpop.xlane.xlu0 %1256
        %v1258 = vsel %vm650, %v1212, -inf
        %1259 = vmax.xlane.f32.xlu0 %v1258
        %v1260 = vpop.xlane.xlu0 %1259
        %vm1261 = vcmp.eq.f32.partialorder %v1197, %v1215
        %vm1262 = vcmp.eq.f32.partialorder %v1198, %v1218
        %vm1263 = vcmp.eq.f32.partialorder %v1199, %v1221
        %vm1264 = vcmp.eq.f32.partialorder %v1200, %v1224
        %vm1265 = vcmp.eq.f32.partialorder %v1201, %v1227
        %vm1266 = vcmp.eq.f32.partialorder %v1202, %v1230
        %vm1267 = vcmp.eq.f32.partialorder %v1203, %v1233
        %vm1268 = vcmp.eq.f32.partialorder %v1204, %v1236
        %vm1269 = vcmp.eq.f32.partialorder %v1205, %v1239
        %vm1270 = vcmp.eq.f32.partialorder %v1206, %v1242
        %vm1271 = vcmp.eq.f32.partialorder %v1207, %v1245
        %vm1272 = vcmp.eq.f32.partialorder %v1208, %v1248
        %vm1273 = vcmp.eq.f32.partialorder %v1209, %v1251
        %vm1274 = vcmp.eq.f32.partialorder %v1210, %v1254
        %vm1275 = vcmp.eq.f32.partialorder %v1211, %v1257
        %vm1276 = vcmp.eq.f32.partialorder %v1212, %v1260
        %v1277 = vsel %vm1261, %v828, 4
        %v1278 = vsel %vm1262, %v828, 4
        %v1279 = vsel %vm1263, %v828, 4
        %v1280 = vsel %vm1264, %v828, 4
        %v1281 = vsel %vm1265, %v828, 4
        %v1282 = vsel %vm1266, %v828, 4
        %v1283 = vsel %vm1267, %v828, 4
        %v1284 = vsel %vm1268, %v828, 4
        %v1285 = vsel %vm1269, %v828, 4
        %v1286 = vsel %vm1270, %v828, 4
        %v1287 = vsel %vm1271, %v828, 4
        %v1288 = vsel %vm1272, %v828, 4
        %v1289 = vsel %vm1273, %v828, 4
        %v1290 = vsel %vm1274, %v828, 4
        %v1291 = vsel %vm1275, %v828, 4
        %v1292 = vsel %vm1276, %v828, 4
        %v1293 = vsel %vm650, %v1277, 2147483647
        %v1294 = vand.u32 %v1293, 65535
        %v1295 = vshra.s32 %v1293, 16
        %v1296 = vcvt.s32.f32 %v1294
        %v1297 = vcvt.s32.f32 %v1295
        %1298 = vmin.xlane.f32.xlu0 %v1297
        %v1299 = vpop.xlane.xlu0 %1298
        %vm1300 = vcmp.eq.f32.partialorder %v1297, %v1299
        %v1301 = vsel %vm1300, %v1296, inf
        %1302 = vmin.xlane.f32.xlu0 %v1301
        %v1303 = vpop.xlane.xlu0 %1302
        %v1304 = vcvt.f32.s32 %v1303
        %v1305 = vcvt.f32.s32 %v1299
        %v1306 = vshll.u32 %v1305, 16
        %v1307 = vadd.s32 %v1306, %v1304
        %v1308 = vsel %vm650, %v1278, 2147483647
        %v1309 = vand.u32 %v1308, 65535
        %v1310 = vshra.s32 %v1308, 16
        %v1311 = vcvt.s32.f32 %v1309
        %v1312 = vcvt.s32.f32 %v1310
        %1313 = vmin.xlane.f32.xlu0 %v1312
        %v1314 = vpop.xlane.xlu0 %1313
        %vm1315 = vcmp.eq.f32.partialorder %v1312, %v1314
        %v1316 = vsel %vm1315, %v1311, inf
        %1317 = vmin.xlane.f32.xlu0 %v1316
        %v1318 = vpop.xlane.xlu0 %1317
        %v1319 = vcvt.f32.s32 %v1318
        %v1320 = vcvt.f32.s32 %v1314
        %v1321 = vshll.u32 %v1320, 16
        %v1322 = vadd.s32 %v1321, %v1319
        %v1323 = vsel %vm650, %v1279, 2147483647
        %v1324 = vand.u32 %v1323, 65535
        %v1325 = vshra.s32 %v1323, 16
        %v1326 = vcvt.s32.f32 %v1324
        %v1327 = vcvt.s32.f32 %v1325
        %1328 = vmin.xlane.f32.xlu0 %v1327
        %v1329 = vpop.xlane.xlu0 %1328
        %vm1330 = vcmp.eq.f32.partialorder %v1327, %v1329
        %v1331 = vsel %vm1330, %v1326, inf
        %1332 = vmin.xlane.f32.xlu0 %v1331
        %v1333 = vpop.xlane.xlu0 %1332
        %v1334 = vcvt.f32.s32 %v1333
        %v1335 = vcvt.f32.s32 %v1329
        %v1336 = vshll.u32 %v1335, 16
        %v1337 = vadd.s32 %v1336, %v1334
        %v1338 = vsel %vm650, %v1280, 2147483647
        %v1339 = vand.u32 %v1338, 65535
        %v1340 = vshra.s32 %v1338, 16
        %v1341 = vcvt.s32.f32 %v1339
        %v1342 = vcvt.s32.f32 %v1340
        %1343 = vmin.xlane.f32.xlu0 %v1342
        %v1344 = vpop.xlane.xlu0 %1343
        %vm1345 = vcmp.eq.f32.partialorder %v1342, %v1344
        %v1346 = vsel %vm1345, %v1341, inf
        %1347 = vmin.xlane.f32.xlu0 %v1346
        %v1348 = vpop.xlane.xlu0 %1347
        %v1349 = vcvt.f32.s32 %v1348
        %v1350 = vcvt.f32.s32 %v1344
        %v1351 = vshll.u32 %v1350, 16
        %v1352 = vadd.s32 %v1351, %v1349
        %v1353 = vsel %vm650, %v1281, 2147483647
        %v1354 = vand.u32 %v1353, 65535
        %v1355 = vshra.s32 %v1353, 16
        %v1356 = vcvt.s32.f32 %v1354
        %v1357 = vcvt.s32.f32 %v1355
        %1358 = vmin.xlane.f32.xlu0 %v1357
        %v1359 = vpop.xlane.xlu0 %1358
        %vm1360 = vcmp.eq.f32.partialorder %v1357, %v1359
        %v1361 = vsel %vm1360, %v1356, inf
        %1362 = vmin.xlane.f32.xlu0 %v1361
        %v1363 = vpop.xlane.xlu0 %1362
        %v1364 = vcvt.f32.s32 %v1363
        %v1365 = vcvt.f32.s32 %v1359
        %v1366 = vshll.u32 %v1365, 16
        %v1367 = vadd.s32 %v1366, %v1364
        %v1368 = vsel %vm650, %v1282, 2147483647
        %v1369 = vand.u32 %v1368, 65535
        %v1370 = vshra.s32 %v1368, 16
        %v1371 = vcvt.s32.f32 %v1369
        %v1372 = vcvt.s32.f32 %v1370
        %1373 = vmin.xlane.f32.xlu0 %v1372
        %v1374 = vpop.xlane.xlu0 %1373
        %vm1375 = vcmp.eq.f32.partialorder %v1372, %v1374
        %v1376 = vsel %vm1375, %v1371, inf
        %1377 = vmin.xlane.f32.xlu0 %v1376
        %v1378 = vpop.xlane.xlu0 %1377
        %v1379 = vcvt.f32.s32 %v1378
        %v1380 = vcvt.f32.s32 %v1374
        %v1381 = vshll.u32 %v1380, 16
        %v1382 = vadd.s32 %v1381, %v1379
        %v1383 = vsel %vm650, %v1283, 2147483647
        %v1384 = vand.u32 %v1383, 65535
        %v1385 = vshra.s32 %v1383, 16
        %v1386 = vcvt.s32.f32 %v1384
        %v1387 = vcvt.s32.f32 %v1385
        %1388 = vmin.xlane.f32.xlu0 %v1387
        %v1389 = vpop.xlane.xlu0 %1388
        %vm1390 = vcmp.eq.f32.partialorder %v1387, %v1389
        %v1391 = vsel %vm1390, %v1386, inf
        %1392 = vmin.xlane.f32.xlu0 %v1391
        %v1393 = vpop.xlane.xlu0 %1392
        %v1394 = vcvt.f32.s32 %v1393
        %v1395 = vcvt.f32.s32 %v1389
        %v1396 = vshll.u32 %v1395, 16
        %v1397 = vadd.s32 %v1396, %v1394
        %v1398 = vsel %vm650, %v1284, 2147483647
        %v1399 = vand.u32 %v1398, 65535
        %v1400 = vshra.s32 %v1398, 16
        %v1401 = vcvt.s32.f32 %v1399
        %v1402 = vcvt.s32.f32 %v1400
        %1403 = vmin.xlane.f32.xlu0 %v1402
        %v1404 = vpop.xlane.xlu0 %1403
        %vm1405 = vcmp.eq.f32.partialorder %v1402, %v1404
        %v1406 = vsel %vm1405, %v1401, inf
        %1407 = vmin.xlane.f32.xlu0 %v1406
        %v1408 = vpop.xlane.xlu0 %1407
        %v1409 = vcvt.f32.s32 %v1408
        %v1410 = vcvt.f32.s32 %v1404
        %v1411 = vshll.u32 %v1410, 16
        %v1412 = vadd.s32 %v1411, %v1409
        %v1413 = vsel %vm650, %v1285, 2147483647
        %v1414 = vand.u32 %v1413, 65535
        %v1415 = vshra.s32 %v1413, 16
        %v1416 = vcvt.s32.f32 %v1414
        %v1417 = vcvt.s32.f32 %v1415
        %1418 = vmin.xlane.f32.xlu0 %v1417
        %v1419 = vpop.xlane.xlu0 %1418
        %vm1420 = vcmp.eq.f32.partialorder %v1417, %v1419
        %v1421 = vsel %vm1420, %v1416, inf
        %1422 = vmin.xlane.f32.xlu0 %v1421
        %v1423 = vpop.xlane.xlu0 %1422
        %v1424 = vcvt.f32.s32 %v1423
        %v1425 = vcvt.f32.s32 %v1419
        %v1426 = vshll.u32 %v1425, 16
        %v1427 = vadd.s32 %v1426, %v1424
        %v1428 = vsel %vm650, %v1286, 2147483647
        %v1429 = vand.u32 %v1428, 65535
        %v1430 = vshra.s32 %v1428, 16
        %v1431 = vcvt.s32.f32 %v1429
        %v1432 = vcvt.s32.f32 %v1430
        %1433 = vmin.xlane.f32.xlu0 %v1432
        %v1434 = vpop.xlane.xlu0 %1433
        %vm1435 = vcmp.eq.f32.partialorder %v1432, %v1434
        %v1436 = vsel %vm1435, %v1431, inf
        %1437 = vmin.xlane.f32.xlu0 %v1436
        %v1438 = vpop.xlane.xlu0 %1437
        %v1439 = vcvt.f32.s32 %v1438
        %v1440 = vcvt.f32.s32 %v1434
        %v1441 = vshll.u32 %v1440, 16
        %v1442 = vadd.s32 %v1441, %v1439
        %v1443 = vsel %vm650, %v1287, 2147483647
        %v1444 = vand.u32 %v1443, 65535
        %v1445 = vshra.s32 %v1443, 16
        %v1446 = vcvt.s32.f32 %v1444
        %v1447 = vcvt.s32.f32 %v1445
        %1448 = vmin.xlane.f32.xlu0 %v1447
        %v1449 = vpop.xlane.xlu0 %1448
        %vm1450 = vcmp.eq.f32.partialorder %v1447, %v1449
        %v1451 = vsel %vm1450, %v1446, inf
        %1452 = vmin.xlane.f32.xlu0 %v1451
        %v1453 = vpop.xlane.xlu0 %1452
        %v1454 = vcvt.f32.s32 %v1453
        %v1455 = vcvt.f32.s32 %v1449
        %v1456 = vshll.u32 %v1455, 16
        %v1457 = vadd.s32 %v1456, %v1454
        %v1458 = vsel %vm650, %v1288, 2147483647
        %v1459 = vand.u32 %v1458, 65535
        %v1460 = vshra.s32 %v1458, 16
        %v1461 = vcvt.s32.f32 %v1459
        %v1462 = vcvt.s32.f32 %v1460
        %1463 = vmin.xlane.f32.xlu0 %v1462
        %v1464 = vpop.xlane.xlu0 %1463
        %vm1465 = vcmp.eq.f32.partialorder %v1462, %v1464
        %v1466 = vsel %vm1465, %v1461, inf
        %1467 = vmin.xlane.f32.xlu0 %v1466
        %v1468 = vpop.xlane.xlu0 %1467
        %v1469 = vcvt.f32.s32 %v1468
        %v1470 = vcvt.f32.s32 %v1464
        %v1471 = vshll.u32 %v1470, 16
        %v1472 = vadd.s32 %v1471, %v1469
        %v1473 = vsel %vm650, %v1289, 2147483647
        %v1474 = vand.u32 %v1473, 65535
        %v1475 = vshra.s32 %v1473, 16
        %v1476 = vcvt.s32.f32 %v1474
        %v1477 = vcvt.s32.f32 %v1475
        %1478 = vmin.xlane.f32.xlu0 %v1477
        %v1479 = vpop.xlane.xlu0 %1478
        %vm1480 = vcmp.eq.f32.partialorder %v1477, %v1479
        %v1481 = vsel %vm1480, %v1476, inf
        %1482 = vmin.xlane.f32.xlu0 %v1481
        %v1483 = vpop.xlane.xlu0 %1482
        %v1484 = vcvt.f32.s32 %v1483
        %v1485 = vcvt.f32.s32 %v1479
        %v1486 = vshll.u32 %v1485, 16
        %v1487 = vadd.s32 %v1486, %v1484
        %v1488 = vsel %vm650, %v1290, 2147483647
        %v1489 = vand.u32 %v1488, 65535
        %v1490 = vshra.s32 %v1488, 16
        %v1491 = vcvt.s32.f32 %v1489
        %v1492 = vcvt.s32.f32 %v1490
        %1493 = vmin.xlane.f32.xlu0 %v1492
        %v1494 = vpop.xlane.xlu0 %1493
        %vm1495 = vcmp.eq.f32.partialorder %v1492, %v1494
        %v1496 = vsel %vm1495, %v1491, inf
        %1497 = vmin.xlane.f32.xlu0 %v1496
        %v1498 = vpop.xlane.xlu0 %1497
        %v1499 = vcvt.f32.s32 %v1498
        %v1500 = vcvt.f32.s32 %v1494
        %v1501 = vshll.u32 %v1500, 16
        %v1502 = vadd.s32 %v1501, %v1499
        %v1503 = vsel %vm650, %v1291, 2147483647
        %v1504 = vand.u32 %v1503, 65535
        %v1505 = vshra.s32 %v1503, 16
        %v1506 = vcvt.s32.f32 %v1504
        %v1507 = vcvt.s32.f32 %v1505
        %1508 = vmin.xlane.f32.xlu0 %v1507
        %v1509 = vpop.xlane.xlu0 %1508
        %vm1510 = vcmp.eq.f32.partialorder %v1507, %v1509
        %v1511 = vsel %vm1510, %v1506, inf
        %1512 = vmin.xlane.f32.xlu0 %v1511
        %v1513 = vpop.xlane.xlu0 %1512
        %v1514 = vcvt.f32.s32 %v1513
        %v1515 = vcvt.f32.s32 %v1509
        %v1516 = vshll.u32 %v1515, 16
        %v1517 = vadd.s32 %v1516, %v1514
        %v1518 = vsel %vm650, %v1292, 2147483647
        %v1519 = vand.u32 %v1518, 65535
        %v1520 = vshra.s32 %v1518, 16
        %v1521 = vcvt.s32.f32 %v1519
        %v1522 = vcvt.s32.f32 %v1520
        %1523 = vmin.xlane.f32.xlu0 %v1522
        %v1524 = vpop.xlane.xlu0 %1523
        %vm1525 = vcmp.eq.f32.partialorder %v1522, %v1524
        %v1526 = vsel %vm1525, %v1521, inf
        %1527 = vmin.xlane.f32.xlu0 %v1526
        %v1528 = vpop.xlane.xlu0 %1527
        %v1529 = vcvt.f32.s32 %v1528
        %v1530 = vcvt.f32.s32 %v1524
        %v1531 = vshll.u32 %v1530, 16
        %v1532 = vadd.s32 %v1531, %v1529
        %vm1533 = vcmp.eq.s32.totalorder %v828, %v1307
        %vm1534 = vcmp.eq.s32.totalorder %v828, %v1322
        %vm1535 = vcmp.eq.s32.totalorder %v828, %v1337
        %vm1536 = vcmp.eq.s32.totalorder %v828, %v1352
        %vm1537 = vcmp.eq.s32.totalorder %v828, %v1367
        %vm1538 = vcmp.eq.s32.totalorder %v828, %v1382
        %vm1539 = vcmp.eq.s32.totalorder %v828, %v1397
        %vm1540 = vcmp.eq.s32.totalorder %v828, %v1412
        %vm1541 = vcmp.eq.s32.totalorder %v828, %v1427
        %vm1542 = vcmp.eq.s32.totalorder %v828, %v1442
        %vm1543 = vcmp.eq.s32.totalorder %v828, %v1457
        %vm1544 = vcmp.eq.s32.totalorder %v828, %v1472
        %vm1545 = vcmp.eq.s32.totalorder %v828, %v1487
        %vm1546 = vcmp.eq.s32.totalorder %v828, %v1502
        %vm1547 = vcmp.eq.s32.totalorder %v828, %v1517
        %vm1548 = vcmp.eq.s32.totalorder %v828, %v1532
        %v1549 = vsel %vm1533, %v796, 0.0
        %v1550 = vsel %vm1534, %v798, 0.0
        %v1551 = vsel %vm1535, %v800, 0.0
        %v1552 = vsel %vm1536, %v802, 0.0
        %v1553 = vsel %vm1537, %v804, 0.0
        %v1554 = vsel %vm1538, %v806, 0.0
        %v1555 = vsel %vm1539, %v808, 0.0
        %v1556 = vsel %vm1540, %v810, 0.0
        %v1557 = vsel %vm1541, %v812, 0.0
        %v1558 = vsel %vm1542, %v814, 0.0
        %v1559 = vsel %vm1543, %v816, 0.0
        %v1560 = vsel %vm1544, %v818, 0.0
        %v1561 = vsel %vm1545, %v820, 0.0
        %v1562 = vsel %vm1546, %v822, 0.0
        %v1563 = vsel %vm1547, %v824, 0.0
        %v1564 = vsel %vm1548, %v826, 0.0
        %v1565 = vadd.f32 %v1181, %v1549
        %v1566 = vadd.f32 %v1182, %v1550
        %v1567 = vadd.f32 %v1183, %v1551
        %v1568 = vadd.f32 %v1184, %v1552
        %v1569 = vadd.f32 %v1185, %v1553
        %v1570 = vadd.f32 %v1186, %v1554
        %v1571 = vadd.f32 %v1187, %v1555
        %v1572 = vadd.f32 %v1188, %v1556
        %v1573 = vadd.f32 %v1189, %v1557
        %v1574 = vadd.f32 %v1190, %v1558
        %v1575 = vadd.f32 %v1191, %v1559
        %v1576 = vadd.f32 %v1192, %v1560
        %v1577 = vadd.f32 %v1193, %v1561
        %v1578 = vadd.f32 %v1194, %v1562
        %v1579 = vadd.f32 %v1195, %v1563
        %v1580 = vadd.f32 %v1196, %v1564
        %1581 = vst.msk [vmem:[#allocation3] sm:$0xff] %vm650, %v1565
        %1582 = vst.msk [vmem:[#allocation3 + $0x8] sm:$0xff] %vm650, %v1566
        %1583 = vst.msk [vmem:[#allocation3 + $0x10] sm:$0xff] %vm650, %v1567
        %1584 = vst.msk [vmem:[#allocation3 + $0x18] sm:$0xff] %vm650, %v1568
        %1585 = vst.msk [vmem:[#allocation3 + $0x20] sm:$0xff] %vm650, %v1569
        %1586 = vst.msk [vmem:[#allocation3 + $0x28] sm:$0xff] %vm650, %v1570
        %1587 = vst.msk [vmem:[#allocation3 + $0x30] sm:$0xff] %vm650, %v1571
        %1588 = vst.msk [vmem:[#allocation3 + $0x38] sm:$0xff] %vm650, %v1572
        %1589 = vst.msk [vmem:[#allocation3 + $0x40] sm:$0xff] %vm650, %v1573
        %1590 = vst.msk [vmem:[#allocation3 + $0x48] sm:$0xff] %vm650, %v1574
        %1591 = vst.msk [vmem:[#allocation3 + $0x50] sm:$0xff] %vm650, %v1575
        %1592 = vst.msk [vmem:[#allocation3 + $0x58] sm:$0xff] %vm650, %v1576
        %1593 = vst.msk [vmem:[#allocation3 + $0x60] sm:$0xff] %vm650, %v1577
        %1594 = vst.msk [vmem:[#allocation3 + $0x68] sm:$0xff] %vm650, %v1578
        %1595 = vst.msk [vmem:[#allocation3 + $0x70] sm:$0xff] %vm650, %v1579
        %1596 = vst.msk [vmem:[#allocation3 + $0x78] sm:$0xff] %vm650, %v1580
        %1597 = vst.msk [vmem:[#allocation2] sm:$0xff] %vm429, 0.0
        %1598 = vst.msk [vmem:[#allocation2 + $0x8] sm:$0xff] %vm429, 0.0
        %1599 = vst.msk [vmem:[#allocation2 + $0x10] sm:$0xff] %vm429, 0.0
        %1600 = vst.msk [vmem:[#allocation2 + $0x18] sm:$0xff] %vm429, 0.0
        %1601 = vst.msk [vmem:[#allocation2 + $0x20] sm:$0xff] %vm429, 0.0
        %1602 = vst.msk [vmem:[#allocation2 + $0x28] sm:$0xff] %vm429, 0.0
        %1603 = vst.msk [vmem:[#allocation2 + $0x30] sm:$0xff] %vm429, 0.0
        %1604 = vst.msk [vmem:[#allocation2 + $0x38] sm:$0xff] %vm429, 0.0
        %1605 = vst.msk [vmem:[#allocation2 + $0x40] sm:$0xff] %vm429, 0.0
        %1606 = vst.msk [vmem:[#allocation2 + $0x48] sm:$0xff] %vm429, 0.0
        %1607 = vst.msk [vmem:[#allocation2 + $0x50] sm:$0xff] %vm429, 0.0
        %1608 = vst.msk [vmem:[#allocation2 + $0x58] sm:$0xff] %vm429, 0.0
        %1609 = vst.msk [vmem:[#allocation2 + $0x60] sm:$0xff] %vm429, 0.0
        %1610 = vst.msk [vmem:[#allocation2 + $0x68] sm:$0xff] %vm429, 0.0
        %1611 = vst.msk [vmem:[#allocation2 + $0x70] sm:$0xff] %vm429, 0.0
        %1612 = vst.msk [vmem:[#allocation2 + $0x78] sm:$0xff] %vm429, 0.0
      $region52: #{tpu_custom_call.1} parent=47 // pred_fallthru
        _
      // Predicated region
      $region53: #{tpu_custom_call.1} parent=47 // pred_check
        %p1613 = pneg %p408
      $region54: #{tpu_custom_call.1} parent=47 // pred_check_branch
        %1615 = sbr.rel (%p1613) target = $region56
      $region55: #{tpu_custom_call.1} parent=47 // pred_region
        %v1616 = vlaneseq
        %v1617 = vand.u32 %v1616, 127
        %v1618 = vstv %s24
        %vm1619 = vcmp.eq.s32.totalorder %v1617, %v1618
        %v1620 = vld [vmem:[#allocation3] sm:$0xff]
        %v1621 = vld [vmem:[#allocation3 + $0x8] sm:$0xff]
        %v1622 = vld [vmem:[#allocation3 + $0x10] sm:$0xff]
        %v1623 = vld [vmem:[#allocation3 + $0x18] sm:$0xff]
        %v1624 = vld [vmem:[#allocation3 + $0x20] sm:$0xff]
        %v1625 = vld [vmem:[#allocation3 + $0x28] sm:$0xff]
        %v1626 = vld [vmem:[#allocation3 + $0x30] sm:$0xff]
        %v1627 = vld [vmem:[#allocation3 + $0x38] sm:$0xff]
        %v1628 = vld [vmem:[#allocation3 + $0x40] sm:$0xff]
        %v1629 = vld [vmem:[#allocation3 + $0x48] sm:$0xff]
        %v1630 = vld [vmem:[#allocation3 + $0x50] sm:$0xff]
        %v1631 = vld [vmem:[#allocation3 + $0x58] sm:$0xff]
        %v1632 = vld [vmem:[#allocation3 + $0x60] sm:$0xff]
        %v1633 = vld [vmem:[#allocation3 + $0x68] sm:$0xff]
        %v1634 = vld [vmem:[#allocation3 + $0x70] sm:$0xff]
        %v1635 = vld [vmem:[#allocation3 + $0x78] sm:$0xff]
        %v1636 = vsel %vm1619, %v1620, 0.0
        %v1637 = vsel %vm1619, %v1621, 0.0
        %v1638 = vsel %vm1619, %v1622, 0.0
        %v1639 = vsel %vm1619, %v1623, 0.0
        %v1640 = vsel %vm1619, %v1624, 0.0
        %v1641 = vsel %vm1619, %v1625, 0.0
        %v1642 = vsel %vm1619, %v1626, 0.0
        %v1643 = vsel %vm1619, %v1627, 0.0
        %v1644 = vsel %vm1619, %v1628, 0.0
        %v1645 = vsel %vm1619, %v1629, 0.0
        %v1646 = vsel %vm1619, %v1630, 0.0
        %v1647 = vsel %vm1619, %v1631, 0.0
        %v1648 = vsel %vm1619, %v1632, 0.0
        %v1649 = vsel %vm1619, %v1633, 0.0
        %v1650 = vsel %vm1619, %v1634, 0.0
        %v1651 = vsel %vm1619, %v1635, 0.0
        %vm1652 = vcmask 31744
        %v1653 = vsel %vm1652, %v1636, 0.0
        %1654 = vadd.xlane.f32.xlu0 %v1653
        %v1655 = vpop.xlane.xlu0 %1654
        %v1656 = vsel %vm1652, %v1637, 0.0
        %1657 = vadd.xlane.f32.xlu0 %v1656
        %v1658 = vpop.xlane.xlu0 %1657
        %v1659 = vsel %vm1652, %v1638, 0.0
        %1660 = vadd.xlane.f32.xlu0 %v1659
        %v1661 = vpop.xlane.xlu0 %1660
        %v1662 = vsel %vm1652, %v1639, 0.0
        %1663 = vadd.xlane.f32.xlu0 %v1662
        %v1664 = vpop.xlane.xlu0 %1663
        %v1665 = vsel %vm1652, %v1640, 0.0
        %1666 = vadd.xlane.f32.xlu0 %v1665
        %v1667 = vpop.xlane.xlu0 %1666
        %v1668 = vsel %vm1652, %v1641, 0.0
        %1669 = vadd.xlane.f32.xlu0 %v1668
        %v1670 = vpop.xlane.xlu0 %1669
        %v1671 = vsel %vm1652, %v1642, 0.0
        %1672 = vadd.xlane.f32.xlu0 %v1671
        %v1673 = vpop.xlane.xlu0 %1672
        %v1674 = vsel %vm1652, %v1643, 0.0
        %1675 = vadd.xlane.f32.xlu0 %v1674
        %v1676 = vpop.xlane.xlu0 %1675
        %v1677 = vsel %vm1652, %v1644, 0.0
        %1678 = vadd.xlane.f32.xlu0 %v1677
        %v1679 = vpop.xlane.xlu0 %1678
        %v1680 = vsel %vm1652, %v1645, 0.0
        %1681 = vadd.xlane.f32.xlu0 %v1680
        %v1682 = vpop.xlane.xlu0 %1681
        %v1683 = vsel %vm1652, %v1646, 0.0
        %1684 = vadd.xlane.f32.xlu0 %v1683
        %v1685 = vpop.xlane.xlu0 %1684
        %v1686 = vsel %vm1652, %v1647, 0.0
        %1687 = vadd.xlane.f32.xlu0 %v1686
        %v1688 = vpop.xlane.xlu0 %1687
        %v1689 = vsel %vm1652, %v1648, 0.0
        %1690 = vadd.xlane.f32.xlu0 %v1689
        %v1691 = vpop.xlane.xlu0 %1690
        %v1692 = vsel %vm1652, %v1649, 0.0
        %1693 = vadd.xlane.f32.xlu0 %v1692
        %v1694 = vpop.xlane.xlu0 %1693
        %v1695 = vsel %vm1652, %v1650, 0.0
        %1696 = vadd.xlane.f32.xlu0 %v1695
        %v1697 = vpop.xlane.xlu0 %1696
        %v1698 = vsel %vm1652, %v1651, 0.0
        %1699 = vadd.xlane.f32.xlu0 %v1698
        %v1700 = vpop.xlane.xlu0 %1699
        %vm1701 = vcmask 7168
        %1702 = vst.msk [vmem:[#allocation4] sm:$0xff] %vm1701, %v1655
        %1703 = vst.msk [vmem:[#allocation4 + $0x8] sm:$0xff] %vm1701, %v1658
        %1704 = vst.msk [vmem:[#allocation4 + $0x10] sm:$0xff] %vm1701, %v1661
        %1705 = vst.msk [vmem:[#allocation4 + $0x18] sm:$0xff] %vm1701, %v1664
        %1706 = vst.msk [vmem:[#allocation4 + $0x20] sm:$0xff] %vm1701, %v1667
        %1707 = vst.msk [vmem:[#allocation4 + $0x28] sm:$0xff] %vm1701, %v1670
        %1708 = vst.msk [vmem:[#allocation4 + $0x30] sm:$0xff] %vm1701, %v1673
        %1709 = vst.msk [vmem:[#allocation4 + $0x38] sm:$0xff] %vm1701, %v1676
        %1710 = vst.msk [vmem:[#allocation4 + $0x40] sm:$0xff] %vm1701, %v1679
        %1711 = vst.msk [vmem:[#allocation4 + $0x48] sm:$0xff] %vm1701, %v1682
        %1712 = vst.msk [vmem:[#allocation4 + $0x50] sm:$0xff] %vm1701, %v1685
        %1713 = vst.msk [vmem:[#allocation4 + $0x58] sm:$0xff] %vm1701, %v1688
        %1714 = vst.msk [vmem:[#allocation4 + $0x60] sm:$0xff] %vm1701, %v1691
        %1715 = vst.msk [vmem:[#allocation4 + $0x68] sm:$0xff] %vm1701, %v1694
        %1716 = vst.msk [vmem:[#allocation4 + $0x70] sm:$0xff] %vm1701, %v1697
        %1717 = vst.msk [vmem:[#allocation4 + $0x78] sm:$0xff] %vm1701, %v1700
        %v1718 = vld [vmem:[#allocation2] sm:$0xff]
        %v1719 = vld [vmem:[#allocation2 + $0x8] sm:$0xff]
        %v1720 = vld [vmem:[#allocation2 + $0x10] sm:$0xff]
        %v1721 = vld [vmem:[#allocation2 + $0x18] sm:$0xff]
        %v1722 = vld [vmem:[#allocation2 + $0x20] sm:$0xff]
        %v1723 = vld [vmem:[#allocation2 + $0x28] sm:$0xff]
        %v1724 = vld [vmem:[#allocation2 + $0x30] sm:$0xff]
        %v1725 = vld [vmem:[#allocation2 + $0x38] sm:$0xff]
        %v1726 = vld [vmem:[#allocation2 + $0x40] sm:$0xff]
        %v1727 = vld [vmem:[#allocation2 + $0x48] sm:$0xff]
        %v1728 = vld [vmem:[#allocation2 + $0x50] sm:$0xff]
        %v1729 = vld [vmem:[#allocation2 + $0x58] sm:$0xff]
        %v1730 = vld [vmem:[#allocation2 + $0x60] sm:$0xff]
        %v1731 = vld [vmem:[#allocation2 + $0x68] sm:$0xff]
        %v1732 = vld [vmem:[#allocation2 + $0x70] sm:$0xff]
        %v1733 = vld [vmem:[#allocation2 + $0x78] sm:$0xff]
        %v1734 = vld [vmem:[#allocation4] sm:$0xff]
        %v1735 = vld [vmem:[#allocation4 + $0x8] sm:$0xff]
        %v1736 = vld [vmem:[#allocation4 + $0x10] sm:$0xff]
        %v1737 = vld [vmem:[#allocation4 + $0x18] sm:$0xff]
        %v1738 = vld [vmem:[#allocation4 + $0x20] sm:$0xff]
        %v1739 = vld [vmem:[#allocation4 + $0x28] sm:$0xff]
        %v1740 = vld [vmem:[#allocation4 + $0x30] sm:$0xff]
        %v1741 = vld [vmem:[#allocation4 + $0x38] sm:$0xff]
        %v1742 = vld [vmem:[#allocation4 + $0x40] sm:$0xff]
        %v1743 = vld [vmem:[#allocation4 + $0x48] sm:$0xff]
        %v1744 = vld [vmem:[#allocation4 + $0x50] sm:$0xff]
        %v1745 = vld [vmem:[#allocation4 + $0x58] sm:$0xff]
        %v1746 = vld [vmem:[#allocation4 + $0x60] sm:$0xff]
        %v1747 = vld [vmem:[#allocation4 + $0x68] sm:$0xff]
        %v1748 = vld [vmem:[#allocation4 + $0x70] sm:$0xff]
        %v1749 = vld [vmem:[#allocation4 + $0x78] sm:$0xff]
        %v1750 = vld [vmem:[%s400] sm:$0x1]
        %1752 = vset.pattern.permute.xlu0 0
        %1753 = vperm.xlu0 %1752, %v1734
        %v1754 = vpop.permute.xlu0 %1753
        %1757 = vset.pattern.permute.xlu0 0
        %1758 = vperm.xlu0 %1757, %v1735
        %v1759 = vpop.permute.xlu0 %1758
        %1762 = vset.pattern.permute.xlu0 0
        %1763 = vperm.xlu0 %1762, %v1736
        %v1764 = vpop.permute.xlu0 %1763
        %1767 = vset.pattern.permute.xlu0 0
        %1768 = vperm.xlu0 %1767, %v1737
        %v1769 = vpop.permute.xlu0 %1768
        %1772 = vset.pattern.permute.xlu0 0
        %1773 = vperm.xlu0 %1772, %v1738
        %v1774 = vpop.permute.xlu0 %1773
        %1777 = vset.pattern.permute.xlu0 0
        %1778 = vperm.xlu0 %1777, %v1739
        %v1779 = vpop.permute.xlu0 %1778
        %1782 = vset.pattern.permute.xlu0 0
        %1783 = vperm.xlu0 %1782, %v1740
        %v1784 = vpop.permute.xlu0 %1783
        %1787 = vset.pattern.permute.xlu0 0
        %1788 = vperm.xlu0 %1787, %v1741
        %v1789 = vpop.permute.xlu0 %1788
        %1792 = vset.pattern.permute.xlu0 0
        %1793 = vperm.xlu0 %1792, %v1742
        %v1794 = vpop.permute.xlu0 %1793
        %1797 = vset.pattern.permute.xlu0 0
        %1798 = vperm.xlu0 %1797, %v1743
        %v1799 = vpop.permute.xlu0 %1798
        %1802 = vset.pattern.permute.xlu0 0
        %1803 = vperm.xlu0 %1802, %v1744
        %v1804 = vpop.permute.xlu0 %1803
        %1807 = vset.pattern.permute.xlu0 0
        %1808 = vperm.xlu0 %1807, %v1745
        %v1809 = vpop.permute.xlu0 %1808
        %1812 = vset.pattern.permute.xlu0 0
        %1813 = vperm.xlu0 %1812, %v1746
        %v1814 = vpop.permute.xlu0 %1813
        %1817 = vset.pattern.permute.xlu0 0
        %1818 = vperm.xlu0 %1817, %v1747
        %v1819 = vpop.permute.xlu0 %1818
        %1822 = vset.pattern.permute.xlu0 0
        %1823 = vperm.xlu0 %1822, %v1748
        %v1824 = vpop.permute.xlu0 %1823
        %1827 = vset.pattern.permute.xlu0 0
        %1828 = vperm.xlu0 %1827, %v1749
        %v1829 = vpop.permute.xlu0 %1828
        %v1832 = vlaneseq
        %v1833 = vshrl.u32 %v1832, 7
        %v1834 = vsub.s32 0, %v1833
        %v1835 = vrot.slane %v1750, %v1834
        %v1837 = vmul.f32 %v1754, %v1835
        %v1838 = vmul.f32 %v1759, %v1835
        %v1839 = vmul.f32 %v1764, %v1835
        %v1840 = vmul.f32 %v1769, %v1835
        %v1841 = vmul.f32 %v1774, %v1835
        %v1842 = vmul.f32 %v1779, %v1835
        %v1843 = vmul.f32 %v1784, %v1835
        %v1844 = vmul.f32 %v1789, %v1835
        %v1845 = vmul.f32 %v1794, %v1835
        %v1846 = vmul.f32 %v1799, %v1835
        %v1847 = vmul.f32 %v1804, %v1835
        %v1848 = vmul.f32 %v1809, %v1835
        %v1849 = vmul.f32 %v1814, %v1835
        %v1850 = vmul.f32 %v1819, %v1835
        %v1851 = vmul.f32 %v1824, %v1835
        %v1852 = vmul.f32 %v1829, %v1835
        %v1853 = vadd.f32 %v1718, %v1837
        %v1854 = vadd.f32 %v1719, %v1838
        %v1855 = vadd.f32 %v1720, %v1839
        %v1856 = vadd.f32 %v1721, %v1840
        %v1857 = vadd.f32 %v1722, %v1841
        %v1858 = vadd.f32 %v1723, %v1842
        %v1859 = vadd.f32 %v1724, %v1843
        %v1860 = vadd.f32 %v1725, %v1844
        %v1861 = vadd.f32 %v1726, %v1845
        %v1862 = vadd.f32 %v1727, %v1846
        %v1863 = vadd.f32 %v1728, %v1847
        %v1864 = vadd.f32 %v1729, %v1848
        %v1865 = vadd.f32 %v1730, %v1849
        %v1866 = vadd.f32 %v1731, %v1850
        %v1867 = vadd.f32 %v1732, %v1851
        %v1868 = vadd.f32 %v1733, %v1852
        %vm1869 = vcmask 261120
        %1870 = vst.msk [vmem:[#allocation2] sm:$0xff] %vm1869, %v1853
        %1871 = vst.msk [vmem:[#allocation2 + $0x8] sm:$0xff] %vm1869, %v1854
        %1872 = vst.msk [vmem:[#allocation2 + $0x10] sm:$0xff] %vm1869, %v1855
        %1873 = vst.msk [vmem:[#allocation2 + $0x18] sm:$0xff] %vm1869, %v1856
        %1874 = vst.msk [vmem:[#allocation2 + $0x20] sm:$0xff] %vm1869, %v1857
        %1875 = vst.msk [vmem:[#allocation2 + $0x28] sm:$0xff] %vm1869, %v1858
        %1876 = vst.msk [vmem:[#allocation2 + $0x30] sm:$0xff] %vm1869, %v1859
        %1877 = vst.msk [vmem:[#allocation2 + $0x38] sm:$0xff] %vm1869, %v1860
        %1878 = vst.msk [vmem:[#allocation2 + $0x40] sm:$0xff] %vm1869, %v1861
        %1879 = vst.msk [vmem:[#allocation2 + $0x48] sm:$0xff] %vm1869, %v1862
        %1880 = vst.msk [vmem:[#allocation2 + $0x50] sm:$0xff] %vm1869, %v1863
        %1881 = vst.msk [vmem:[#allocation2 + $0x58] sm:$0xff] %vm1869, %v1864
        %1882 = vst.msk [vmem:[#allocation2 + $0x60] sm:$0xff] %vm1869, %v1865
        %1883 = vst.msk [vmem:[#allocation2 + $0x68] sm:$0xff] %vm1869, %v1866
        %1884 = vst.msk [vmem:[#allocation2 + $0x70] sm:$0xff] %vm1869, %v1867
        %1885 = vst.msk [vmem:[#allocation2 + $0x78] sm:$0xff] %vm1869, %v1868
      $region56: #{tpu_custom_call.1} parent=47 // pred_fallthru
        _
      %v1886 = vld [vmem:[#allocation5] sm:$0xff]
      %v1887 = vld [vmem:[#allocation5 + $0x8] sm:$0xff]
      %v1888 = vld [vmem:[#allocation5 + $0x10] sm:$0xff]
      %v1889 = vld [vmem:[#allocation5 + $0x18] sm:$0xff]
      %v1890 = vld [vmem:[#allocation5 + $0x20] sm:$0xff]
      %v1891 = vld [vmem:[#allocation5 + $0x28] sm:$0xff]
      %v1892 = vld [vmem:[#allocation5 + $0x30] sm:$0xff]
      %v1893 = vld [vmem:[#allocation5 + $0x38] sm:$0xff]
      %v1894 = vld [vmem:[#allocation5 + $0x40] sm:$0xff]
      %v1895 = vld [vmem:[#allocation5 + $0x48] sm:$0xff]
      %v1896 = vld [vmem:[#allocation5 + $0x50] sm:$0xff]
      %v1897 = vld [vmem:[#allocation5 + $0x58] sm:$0xff]
      %v1898 = vld [vmem:[#allocation5 + $0x60] sm:$0xff]
      %v1899 = vld [vmem:[#allocation5 + $0x68] sm:$0xff]
      %v1900 = vld [vmem:[#allocation5 + $0x70] sm:$0xff]
      %v1901 = vld [vmem:[#allocation5 + $0x78] sm:$0xff]
      %v1902 = vld [vmem:[%s381] sm:$0xff]
      %v1903 = vld [vmem:[%s381 + $0x8] sm:$0xff]
      %v1904 = vld [vmem:[%s381 + $0x10] sm:$0xff]
      %v1905 = vld [vmem:[%s381 + $0x18] sm:$0xff]
      %v1906 = vld [vmem:[%s387] sm:$0x1]
      %v1908 = vlaneseq
      %v1909 = vshrl.u32 %v1908, 7
      %v1910 = vsub.s32 0, %v1909
      %v1911 = vrot.slane %v1906, %v1910
      %vm1913 = vcmask 261120
      %v1915 = vsel %vm1913, %v1886, 0
      %v1918 = vsel %vm1913, %v1887, 0
      %v1921 = vsel %vm1913, %v1888, 0
      %v1924 = vsel %vm1913, %v1889, 0
      %v1927 = vsel %vm1913, %v1890, 0
      %v1930 = vsel %vm1913, %v1891, 0
      %v1933 = vsel %vm1913, %v1892, 0
      %v1936 = vsel %vm1913, %v1893, 0
      %v1939 = vsel %vm1913, %v1894, 0
      %v1942 = vsel %vm1913, %v1895, 0
      %v1945 = vsel %vm1913, %v1896, 0
      %v1948 = vsel %vm1913, %v1897, 0
      %v1951 = vsel %vm1913, %v1898, 0
      %v1954 = vsel %vm1913, %v1899, 0
      %v1957 = vsel %vm1913, %v1900, 0
      %v1960 = vsel %vm1913, %v1901, 0
      %1962 = vmatprep.subr.mxu0 0.0
      %1963 = vmatpush1.msra.mxu0 %v1902
      %1964 = vmatprep.subr.mxu0 0.0
      %1965 = vmatpush1.msra.mxu0 %v1903
      %1966 = vmatprep.subr.mxu0 0.0
      %1967 = vmatpush1.msra.mxu0 %v1904
      %1968 = vmatprep.subr.mxu0 0.0
      %1969 = vmatpush1.msra.mxu0 %v1905
      %1970 = vmatprep.subr.mxu0 0.0
      %1971 = vmatpush1.msra.mxu0 0.0
      %1972 = vmatprep.subr.mxu0 0.0
      %1973 = vmatpush1.msra.mxu0 0.0
      %1974 = vmatprep.subr.mxu0 0.0
      %1975 = vmatpush1.msra.mxu0 0.0
      %1976 = vmatprep.subr.mxu0 0.0
      %1977 = vmatpush1.msra.mxu0 0.0
      %1978 = vmatprep.subr.mxu0 0.0
      %1979 = vmatpush1.msra.mxu0 0.0
      %1980 = vmatprep.subr.mxu0 0.0
      %1981 = vmatpush1.msra.mxu0 0.0
      %1982 = vmatprep.subr.mxu0 0.0
      %1983 = vmatpush1.msra.mxu0 0.0
      %1984 = vmatprep.subr.mxu0 0.0
      %1985 = vmatpush1.msra.mxu0 0.0
      %1986 = vmatprep.subr.mxu0 0.0
      %1987 = vmatpush1.msra.mxu0 0.0
      %1988 = vmatprep.subr.mxu0 0.0
      %1989 = vmatpush1.msra.mxu0 0.0
      %1990 = vmatprep.subr.mxu0 0.0
      %1991 = vmatpush1.msra.mxu0 0.0
      %1992 = vmatprep.subr.mxu0 0.0
      %1993 = vmatpush1.msra.mxu0 0.0
      %1994 = vmatprep.subr.mxu0 0.0
      %1995 = vmatpush1.msra.mxu0 0.0
      %1996 = vmatprep.subr.mxu0 0.0
      %1997 = vmatpush1.msra.mxu0 0.0
      %1998 = vmatprep.subr.mxu0 0.0
      %1999 = vmatpush1.msra.mxu0 0.0
      %2000 = vmatprep.subr.mxu0 0.0
      %2001 = vmatpush1.msra.mxu0 0.0
      %2002 = vmatprep.subr.mxu0 0.0
      %2003 = vmatpush1.msra.mxu0 0.0
      %2004 = vmatprep.subr.mxu0 0.0
      %2005 = vmatpush1.msra.mxu0 0.0
      %2006 = vmatprep.subr.mxu0 0.0
      %2007 = vmatpush1.msra.mxu0 0.0
      %2008 = vmatprep.subr.mxu0 0.0
      %2009 = vmatpush1.msra.mxu0 0.0
      %2010 = vmatprep.subr.mxu0 0.0
      %2011 = vmatpush1.msra.mxu0 0.0
      %2012 = vmatprep.subr.mxu0 0.0
      %2013 = vmatpush1.msra.mxu0 0.0
      %2014 = vmatprep.subr.mxu0 0.0
      %2015 = vmatpush1.msra.mxu0 0.0
      %2016 = vmatprep.subr.mxu0 0.0
      %2017 = vmatpush1.msra.mxu0 0.0
      %2018 = vmatprep.subr.mxu0 0.0
      %2019 = vmatpush1.msra.mxu0 0.0
      %2020 = vmatprep.subr.mxu0 0.0
      %2021 = vmatpush1.msra.mxu0 0.0
      %2022 = vmatprep.subr.mxu0 0.0
      %2023 = vmatpush1.msra.mxu0 0.0
      %2024 = vmatprep.subr.mxu0 0.0
      %2025 = vmatpush1.msra.mxu0 0.0
      %2026 = vmatprep.mubr.f32.mxu0 0.0
      %2027 = vmatmul.mubr.f32.gmra.mrb[0].mxu0 %v1915
      %v2028 = vpop.f32.mrb[0].mxu0
      %v2029 = vadd.f32 %v1911, %v2028
      %v2030 = vpop.f32.mrb[0].mxu0
      %2031 = vmatprep.mubr.f32.mxu0 0.0
      %2032 = vmatmul.mubr.f32.gmra.mrb[0].mxu0 %v1918
      %v2033 = vpop.f32.mrb[0].mxu0
      %v2034 = vadd.f32 %v1911, %v2033
      %v2035 = vpop.f32.mrb[0].mxu0
      %2036 = vmatprep.mubr.f32.mxu0 0.0
      %2037 = vmatmul.mubr.f32.gmra.mrb[0].mxu0 %v1921
      %v2038 = vpop.f32.mrb[0].mxu0
      %v2039 = vadd.f32 %v1911, %v2038
      %v2040 = vpop.f32.mrb[0].mxu0
      %2041 = vmatprep.mubr.f32.mxu0 0.0
      %2042 = vmatmul.mubr.f32.gmra.mrb[0].mxu0 %v1924
      %v2043 = vpop.f32.mrb[0].mxu0
      %v2044 = vadd.f32 %v1911, %v2043
      %v2045 = vpop.f32.mrb[0].mxu0
      %2046 = vmatprep.mubr.f32.mxu0 0.0
      %2047 = vmatmul.mubr.f32.gmra.mrb[0].mxu0 %v1927
      %v2048 = vpop.f32.mrb[0].mxu0
      %v2049 = vadd.f32 %v1911, %v2048
      %v2050 = vpop.f32.mrb[0].mxu0
      %2051 = vmatprep.mubr.f32.mxu0 0.0
      %2052 = vmatmul.mubr.f32.gmra.mrb[0].mxu0 %v1930
      %v2053 = vpop.f32.mrb[0].mxu0
      %v2054 = vadd.f32 %v1911, %v2053
      %v2055 = vpop.f32.mrb[0].mxu0
      %2056 = vmatprep.mubr.f32.mxu0 0.0
      %2057 = vmatmul.mubr.f32.gmra.mrb[0].mxu0 %v1933
      %v2058 = vpop.f32.mrb[0].mxu0
      %v2059 = vadd.f32 %v1911, %v2058
      %v2060 = vpop.f32.mrb[0].mxu0
      %2061 = vmatprep.mubr.f32.mxu0 0.0
      %2062 = vmatmul.mubr.f32.gmra.mrb[0].mxu0 %v1936
      %v2063 = vpop.f32.mrb[0].mxu0
      %v2064 = vadd.f32 %v1911, %v2063
      %v2065 = vpop.f32.mrb[0].mxu0
      %2066 = vmatprep.mubr.f32.mxu0 0.0
      %2067 = vmatmul.mubr.f32.gmra.mrb[0].mxu0 %v1939
      %v2068 = vpop.f32.mrb[0].mxu0
      %v2069 = vadd.f32 %v1911, %v2068
      %v2070 = vpop.f32.mrb[0].mxu0
      %2071 = vmatprep.mubr.f32.mxu0 0.0
      %2072 = vmatmul.mubr.f32.gmra.mrb[0].mxu0 %v1942
      %v2073 = vpop.f32.mrb[0].mxu0
      %v2074 = vadd.f32 %v1911, %v2073
      %v2075 = vpop.f32.mrb[0].mxu0
      %2076 = vmatprep.mubr.f32.mxu0 0.0
      %2077 = vmatmul.mubr.f32.gmra.mrb[0].mxu0 %v1945
      %v2078 = vpop.f32.mrb[0].mxu0
      %v2079 = vadd.f32 %v1911, %v2078
      %v2080 = vpop.f32.mrb[0].mxu0
      %2081 = vmatprep.mubr.f32.mxu0 0.0
      %2082 = vmatmul.mubr.f32.gmra.mrb[0].mxu0 %v1948
      %v2083 = vpop.f32.mrb[0].mxu0
      %v2084 = vadd.f32 %v1911, %v2083
      %v2085 = vpop.f32.mrb[0].mxu0
      %2086 = vmatprep.mubr.f32.mxu0 0.0
      %2087 = vmatmul.mubr.f32.gmra.mrb[0].mxu0 %v1951
      %v2088 = vpop.f32.mrb[0].mxu0
      %v2089 = vadd.f32 %v1911, %v2088
      %v2090 = vpop.f32.mrb[0].mxu0
      %2091 = vmatprep.mubr.f32.mxu0 0.0
      %2092 = vmatmul.mubr.f32.gmra.mrb[0].mxu0 %v1954
      %v2093 = vpop.f32.mrb[0].mxu0
      %v2094 = vadd.f32 %v1911, %v2093
      %v2095 = vpop.f32.mrb[0].mxu0
      %2096 = vmatprep.mubr.f32.mxu0 0.0
      %2097 = vmatmul.mubr.f32.gmra.mrb[0].mxu0 %v1957
      %v2098 = vpop.f32.mrb[0].mxu0
      %v2099 = vadd.f32 %v1911, %v2098
      %v2100 = vpop.f32.mrb[0].mxu0
      %2101 = vmatprep.mubr.f32.mxu0 0.0
      %2102 = vmatmul.mubr.f32.gmra.mrb[0].mxu0 %v1960
      %v2103 = vpop.f32.mrb[0].mxu0
      %v2104 = vadd.f32 %v1911, %v2103
      %v2105 = vpop.f32.mrb[0].mxu0
      %2106 = vdwg.mxu0
      %v2107 = vmax.f32 %v2029, 0.0
      %v2108 = vmax.f32 %v2034, 0.0
      %v2109 = vmax.f32 %v2039, 0.0
      %v2110 = vmax.f32 %v2044, 0.0
      %v2111 = vmax.f32 %v2049, 0.0
      %v2112 = vmax.f32 %v2054, 0.0
      %v2113 = vmax.f32 %v2059, 0.0
      %v2114 = vmax.f32 %v2064, 0.0
      %v2115 = vmax.f32 %v2069, 0.0
      %v2116 = vmax.f32 %v2074, 0.0
      %v2117 = vmax.f32 %v2079, 0.0
      %v2118 = vmax.f32 %v2084, 0.0
      %v2119 = vmax.f32 %v2089, 0.0
      %v2120 = vmax.f32 %v2094, 0.0
      %v2121 = vmax.f32 %v2099, 0.0
      %v2122 = vmax.f32 %v2104, 0.0
      %v2123 = vld [vmem:[%s396] sm:$0xff]
      %v2124 = vld [vmem:[%s396 + $0x8] sm:$0xff]
      %v2125 = vld [vmem:[%s396 + $0x10] sm:$0xff]
      %v2126 = vld [vmem:[%s396 + $0x18] sm:$0xff]
      %v2127 = vld [vmem:[%s396 + $0x20] sm:$0xff]
      %v2128 = vld [vmem:[%s396 + $0x28] sm:$0xff]
      %v2129 = vld [vmem:[%s396 + $0x30] sm:$0xff]
      %v2130 = vld [vmem:[%s396 + $0x38] sm:$0xff]
      %v2131 = vld [vmem:[%s396 + $0x40] sm:$0xff]
      %v2132 = vld [vmem:[%s396 + $0x48] sm:$0xff]
      %v2133 = vld [vmem:[%s396 + $0x50] sm:$0xff]
      %v2134 = vld [vmem:[%s396 + $0x58] sm:$0xff]
      %v2135 = vld [vmem:[%s396 + $0x60] sm:$0xff]
      %v2136 = vld [vmem:[%s396 + $0x68] sm:$0xff]
      %v2137 = vld [vmem:[%s396 + $0x70] sm:$0xff]
      %v2138 = vld [vmem:[%s396 + $0x78] sm:$0xff]
      %2139 = vmatprep.subr.mxu0 0.0
      %2140 = vmatpush1.msra.mxu0 %v2123
      %2141 = vmatprep.subr.mxu0 0.0
      %2142 = vmatpush1.msra.mxu0 %v2124
      %2143 = vmatprep.subr.mxu0 0.0
      %2144 = vmatpush1.msra.mxu0 %v2125
      %2145 = vmatprep.subr.mxu0 0.0
      %2146 = vmatpush1.msra.mxu0 %v2126
      %2147 = vmatprep.subr.mxu0 0.0
      %2148 = vmatpush1.msra.mxu0 %v2127
      %2149 = vmatprep.subr.mxu0 0.0
      %2150 = vmatpush1.msra.mxu0 %v2128
      %2151 = vmatprep.subr.mxu0 0.0
      %2152 = vmatpush1.msra.mxu0 %v2129
      %2153 = vmatprep.subr.mxu0 0.0
      %2154 = vmatpush1.msra.mxu0 %v2130
      %2155 = vmatprep.subr.mxu0 0.0
      %2156 = vmatpush1.msra.mxu0 %v2131
      %2157 = vmatprep.subr.mxu0 0.0
      %2158 = vmatpush1.msra.mxu0 %v2132
      %2159 = vmatprep.subr.mxu0 0.0
      %2160 = vmatpush1.msra.mxu0 %v2133
      %2161 = vmatprep.subr.mxu0 0.0
      %2162 = vmatpush1.msra.mxu0 %v2134
      %2163 = vmatprep.subr.mxu0 0.0
      %2164 = vmatpush1.msra.mxu0 %v2135
      %2165 = vmatprep.subr.mxu0 0.0
      %2166 = vmatpush1.msra.mxu0 %v2136
      %2167 = vmatprep.subr.mxu0 0.0
      %2168 = vmatpush1.msra.mxu0 %v2137
      %2169 = vmatprep.subr.mxu0 0.0
      %2170 = vmatpush1.msra.mxu0 %v2138
      %2171 = vmatprep.subr.mxu0 0.0
      %2172 = vmatpush1.msra.mxu0 0.0
      %2173 = vmatprep.subr.mxu0 0.0
      %2174 = vmatpush1.msra.mxu0 0.0
      %2175 = vmatprep.subr.mxu0 0.0
      %2176 = vmatpush1.msra.mxu0 0.0
      %2177 = vmatprep.subr.mxu0 0.0
      %2178 = vmatpush1.msra.mxu0 0.0
      %2179 = vmatprep.subr.mxu0 0.0
      %2180 = vmatpush1.msra.mxu0 0.0
      %2181 = vmatprep.subr.mxu0 0.0
      %2182 = vmatpush1.msra.mxu0 0.0
      %2183 = vmatprep.subr.mxu0 0.0
      %2184 = vmatpush1.msra.mxu0 0.0
      %2185 = vmatprep.subr.mxu0 0.0
      %2186 = vmatpush1.msra.mxu0 0.0
      %2187 = vmatprep.subr.mxu0 0.0
      %2188 = vmatpush1.msra.mxu0 0.0
      %2189 = vmatprep.subr.mxu0 0.0
      %2190 = vmatpush1.msra.mxu0 0.0
      %2191 = vmatprep.subr.mxu0 0.0
      %2192 = vmatpush1.msra.mxu0 0.0
      %2193 = vmatprep.subr.mxu0 0.0
      %2194 = vmatpush1.msra.mxu0 0.0
      %2195 = vmatprep.subr.mxu0 0.0
      %2196 = vmatpush1.msra.mxu0 0.0
      %2197 = vmatprep.subr.mxu0 0.0
      %2198 = vmatpush1.msra.mxu0 0.0
      %2199 = vmatprep.subr.mxu0 0.0
      %2200 = vmatpush1.msra.mxu0 0.0
      %2201 = vmatprep.subr.mxu0 0.0
      %2202 = vmatpush1.msra.mxu0 0.0
      %2203 = vmatprep.mubr.f32.mxu0 0.0
      %2204 = vmatmul.mubr.f32.gmra.mrb[0].mxu0 %v2107
      %v2205 = vpop.f32.mrb[0].mxu0
      %v2206 = vadd.f32 0.0, %v2205
      %v2207 = vpop.f32.mrb[0].mxu0
      %2208 = vmatprep.mubr.f32.mxu0 0.0
      %2209 = vmatmul.mubr.f32.gmra.mrb[0].mxu0 %v2108
      %v2210 = vpop.f32.mrb[0].mxu0
      %v2211 = vadd.f32 0.0, %v2210
      %v2212 = vpop.f32.mrb[0].mxu0
      %2213 = vmatprep.mubr.f32.mxu0 0.0
      %2214 = vmatmul.mubr.f32.gmra.mrb[0].mxu0 %v2109
      %v2215 = vpop.f32.mrb[0].mxu0
      %v2216 = vadd.f32 0.0, %v2215
      %v2217 = vpop.f32.mrb[0].mxu0
      %2218 = vmatprep.mubr.f32.mxu0 0.0
      %2219 = vmatmul.mubr.f32.gmra.mrb[0].mxu0 %v2110
      %v2220 = vpop.f32.mrb[0].mxu0
      %v2221 = vadd.f32 0.0, %v2220
      %v2222 = vpop.f32.mrb[0].mxu0
      %2223 = vmatprep.mubr.f32.mxu0 0.0
      %2224 = vmatmul.mubr.f32.gmra.mrb[0].mxu0 %v2111
      %v2225 = vpop.f32.mrb[0].mxu0
      %v2226 = vadd.f32 0.0, %v2225
      %v2227 = vpop.f32.mrb[0].mxu0
      %2228 = vmatprep.mubr.f32.mxu0 0.0
      %2229 = vmatmul.mubr.f32.gmra.mrb[0].mxu0 %v2112
      %v2230 = vpop.f32.mrb[0].mxu0
      %v2231 = vadd.f32 0.0, %v2230
      %v2232 = vpop.f32.mrb[0].mxu0
      %2233 = vmatprep.mubr.f32.mxu0 0.0
      %2234 = vmatmul.mubr.f32.gmra.mrb[0].mxu0 %v2113
      %v2235 = vpop.f32.mrb[0].mxu0
      %v2236 = vadd.f32 0.0, %v2235
      %v2237 = vpop.f32.mrb[0].mxu0
      %2238 = vmatprep.mubr.f32.mxu0 0.0
      %2239 = vmatmul.mubr.f32.gmra.mrb[0].mxu0 %v2114
      %v2240 = vpop.f32.mrb[0].mxu0
      %v2241 = vadd.f32 0.0, %v2240
      %v2242 = vpop.f32.mrb[0].mxu0
      %2243 = vmatprep.mubr.f32.mxu0 0.0
      %2244 = vmatmul.mubr.f32.gmra.mrb[0].mxu0 %v2115
      %v2245 = vpop.f32.mrb[0].mxu0
      %v2246 = vadd.f32 0.0, %v2245
      %v2247 = vpop.f32.mrb[0].mxu0
      %2248 = vmatprep.mubr.f32.mxu0 0.0
      %2249 = vmatmul.mubr.f32.gmra.mrb[0].mxu0 %v2116
      %v2250 = vpop.f32.mrb[0].mxu0
      %v2251 = vadd.f32 0.0, %v2250
      %v2252 = vpop.f32.mrb[0].mxu0
      %2253 = vmatprep.mubr.f32.mxu0 0.0
      %2254 = vmatmul.mubr.f32.gmra.mrb[0].mxu0 %v2117
      %v2255 = vpop.f32.mrb[0].mxu0
      %v2256 = vadd.f32 0.0, %v2255
      %v2257 = vpop.f32.mrb[0].mxu0
      %2258 = vmatprep.mubr.f32.mxu0 0.0
      %2259 = vmatmul.mubr.f32.gmra.mrb[0].mxu0 %v2118
      %v2260 = vpop.f32.mrb[0].mxu0
      %v2261 = vadd.f32 0.0, %v2260
      %v2262 = vpop.f32.mrb[0].mxu0
      %2263 = vmatprep.mubr.f32.mxu0 0.0
      %2264 = vmatmul.mubr.f32.gmra.mrb[0].mxu0 %v2119
      %v2265 = vpop.f32.mrb[0].mxu0
      %v2266 = vadd.f32 0.0, %v2265
      %v2267 = vpop.f32.mrb[0].mxu0
      %2268 = vmatprep.mubr.f32.mxu0 0.0
      %2269 = vmatmul.mubr.f32.gmra.mrb[0].mxu0 %v2120
      %v2270 = vpop.f32.mrb[0].mxu0
      %v2271 = vadd.f32 0.0, %v2270
      %v2272 = vpop.f32.mrb[0].mxu0
      %2273 = vmatprep.mubr.f32.mxu0 0.0
      %2274 = vmatmul.mubr.f32.gmra.mrb[0].mxu0 %v2121
      %v2275 = vpop.f32.mrb[0].mxu0
      %v2276 = vadd.f32 0.0, %v2275
      %v2277 = vpop.f32.mrb[0].mxu0
      %2278 = vmatprep.mubr.f32.mxu0 0.0
      %2279 = vmatmul.mubr.f32.gmra.mrb[0].mxu0 %v2122
      %v2280 = vpop.f32.mrb[0].mxu0
      %v2281 = vadd.f32 0.0, %v2280
      %v2282 = vpop.f32.mrb[0].mxu0
      %2283 = vdwg.mxu0
      %v2284 = vld [vmem:[#allocation2] sm:$0xff]
      %v2285 = vld [vmem:[#allocation2 + $0x8] sm:$0xff]
      %v2286 = vld [vmem:[#allocation2 + $0x10] sm:$0xff]
      %v2287 = vld [vmem:[#allocation2 + $0x18] sm:$0xff]
      %v2288 = vld [vmem:[#allocation2 + $0x20] sm:$0xff]
      %v2289 = vld [vmem:[#allocation2 + $0x28] sm:$0xff]
      %v2290 = vld [vmem:[#allocation2 + $0x30] sm:$0xff]
      %v2291 = vld [vmem:[#allocation2 + $0x38] sm:$0xff]
      %v2292 = vld [vmem:[#allocation2 + $0x40] sm:$0xff]
      %v2293 = vld [vmem:[#allocation2 + $0x48] sm:$0xff]
      %v2294 = vld [vmem:[#allocation2 + $0x50] sm:$0xff]
      %v2295 = vld [vmem:[#allocation2 + $0x58] sm:$0xff]
      %v2296 = vld [vmem:[#allocation2 + $0x60] sm:$0xff]
      %v2297 = vld [vmem:[#allocation2 + $0x68] sm:$0xff]
      %v2298 = vld [vmem:[#allocation2 + $0x70] sm:$0xff]
      %v2299 = vld [vmem:[#allocation2 + $0x78] sm:$0xff]
      %v2300 = vld [vmem:[#allocation4] sm:$0xff]
      %v2301 = vld [vmem:[#allocation4 + $0x8] sm:$0xff]
      %v2302 = vld [vmem:[#allocation4 + $0x10] sm:$0xff]
      %v2303 = vld [vmem:[#allocation4 + $0x18] sm:$0xff]
      %v2304 = vld [vmem:[#allocation4 + $0x20] sm:$0xff]
      %v2305 = vld [vmem:[#allocation4 + $0x28] sm:$0xff]
      %v2306 = vld [vmem:[#allocation4 + $0x30] sm:$0xff]
      %v2307 = vld [vmem:[#allocation4 + $0x38] sm:$0xff]
      %v2308 = vld [vmem:[#allocation4 + $0x40] sm:$0xff]
      %v2309 = vld [vmem:[#allocation4 + $0x48] sm:$0xff]
      %v2310 = vld [vmem:[#allocation4 + $0x50] sm:$0xff]
      %v2311 = vld [vmem:[#allocation4 + $0x58] sm:$0xff]
      %v2312 = vld [vmem:[#allocation4 + $0x60] sm:$0xff]
      %v2313 = vld [vmem:[#allocation4 + $0x68] sm:$0xff]
      %v2314 = vld [vmem:[#allocation4 + $0x70] sm:$0xff]
      %v2315 = vld [vmem:[#allocation4 + $0x78] sm:$0xff]
      %2317 = vset.pattern.permute.xlu0 0
      %2318 = vperm.xlu0 %2317, %v2300
      %v2319 = vpop.permute.xlu0 %2318
      %2322 = vset.pattern.permute.xlu0 0
      %2323 = vperm.xlu0 %2322, %v2301
      %v2324 = vpop.permute.xlu0 %2323
      %2327 = vset.pattern.permute.xlu0 0
      %2328 = vperm.xlu0 %2327, %v2302
      %v2329 = vpop.permute.xlu0 %2328
      %2332 = vset.pattern.permute.xlu0 0
      %2333 = vperm.xlu0 %2332, %v2303
      %v2334 = vpop.permute.xlu0 %2333
      %2337 = vset.pattern.permute.xlu0 0
      %2338 = vperm.xlu0 %2337, %v2304
      %v2339 = vpop.permute.xlu0 %2338
      %2342 = vset.pattern.permute.xlu0 0
      %2343 = vperm.xlu0 %2342, %v2305
      %v2344 = vpop.permute.xlu0 %2343
      %2347 = vset.pattern.permute.xlu0 0
      %2348 = vperm.xlu0 %2347, %v2306
      %v2349 = vpop.permute.xlu0 %2348
      %2352 = vset.pattern.permute.xlu0 0
      %2353 = vperm.xlu0 %2352, %v2307
      %v2354 = vpop.permute.xlu0 %2353
      %2357 = vset.pattern.permute.xlu0 0
      %2358 = vperm.xlu0 %2357, %v2308
      %v2359 = vpop.permute.xlu0 %2358
      %2362 = vset.pattern.permute.xlu0 0
      %2363 = vperm.xlu0 %2362, %v2309
      %v2364 = vpop.permute.xlu0 %2363
      %2367 = vset.pattern.permute.xlu0 0
      %2368 = vperm.xlu0 %2367, %v2310
      %v2369 = vpop.permute.xlu0 %2368
      %2372 = vset.pattern.permute.xlu0 0
      %2373 = vperm.xlu0 %2372, %v2311
      %v2374 = vpop.permute.xlu0 %2373
      %2377 = vset.pattern.permute.xlu0 0
      %2378 = vperm.xlu0 %2377, %v2312
      %v2379 = vpop.permute.xlu0 %2378
      %2382 = vset.pattern.permute.xlu0 0
      %2383 = vperm.xlu0 %2382, %v2313
      %v2384 = vpop.permute.xlu0 %2383
      %2387 = vset.pattern.permute.xlu0 0
      %2388 = vperm.xlu0 %2387, %v2314
      %v2389 = vpop.permute.xlu0 %2388
      %2392 = vset.pattern.permute.xlu0 0
      %2393 = vperm.xlu0 %2392, %v2315
      %v2394 = vpop.permute.xlu0 %2393
      %v2396 = vmul.f32 %v2319, %v2206
      %v2397 = vmul.f32 %v2324, %v2211
      %v2398 = vmul.f32 %v2329, %v2216
      %v2399 = vmul.f32 %v2334, %v2221
      %v2400 = vmul.f32 %v2339, %v2226
      %v2401 = vmul.f32 %v2344, %v2231
      %v2402 = vmul.f32 %v2349, %v2236
      %v2403 = vmul.f32 %v2354, %v2241
      %v2404 = vmul.f32 %v2359, %v2246
      %v2405 = vmul.f32 %v2364, %v2251
      %v2406 = vmul.f32 %v2369, %v2256
      %v2407 = vmul.f32 %v2374, %v2261
      %v2408 = vmul.f32 %v2379, %v2266
      %v2409 = vmul.f32 %v2384, %v2271
      %v2410 = vmul.f32 %v2389, %v2276
      %v2411 = vmul.f32 %v2394, %v2281
      %v2412 = vadd.f32 %v2284, %v2396
      %v2413 = vadd.f32 %v2285, %v2397
      %v2414 = vadd.f32 %v2286, %v2398
      %v2415 = vadd.f32 %v2287, %v2399
      %v2416 = vadd.f32 %v2288, %v2400
      %v2417 = vadd.f32 %v2289, %v2401
      %v2418 = vadd.f32 %v2290, %v2402
      %v2419 = vadd.f32 %v2291, %v2403
      %v2420 = vadd.f32 %v2292, %v2404
      %v2421 = vadd.f32 %v2293, %v2405
      %v2422 = vadd.f32 %v2294, %v2406
      %v2423 = vadd.f32 %v2295, %v2407
      %v2424 = vadd.f32 %v2296, %v2408
      %v2425 = vadd.f32 %v2297, %v2409
      %v2426 = vadd.f32 %v2298, %v2410
      %v2427 = vadd.f32 %v2299, %v2411
      %2428 = vst.msk [vmem:[#allocation2] sm:$0xff] %vm1913, %v2412
      %2429 = vst.msk [vmem:[#allocation2 + $0x8] sm:$0xff] %vm1913, %v2413
      %2430 = vst.msk [vmem:[#allocation2 + $0x10] sm:$0xff] %vm1913, %v2414
      %2431 = vst.msk [vmem:[#allocation2 + $0x18] sm:$0xff] %vm1913, %v2415
      %2432 = vst.msk [vmem:[#allocation2 + $0x20] sm:$0xff] %vm1913, %v2416
      %2433 = vst.msk [vmem:[#allocation2 + $0x28] sm:$0xff] %vm1913, %v2417
      %2434 = vst.msk [vmem:[#allocation2 + $0x30] sm:$0xff] %vm1913, %v2418
      %2435 = vst.msk [vmem:[#allocation2 + $0x38] sm:$0xff] %vm1913, %v2419
      %2436 = vst.msk [vmem:[#allocation2 + $0x40] sm:$0xff] %vm1913, %v2420
      %2437 = vst.msk [vmem:[#allocation2 + $0x48] sm:$0xff] %vm1913, %v2421
      %2438 = vst.msk [vmem:[#allocation2 + $0x50] sm:$0xff] %vm1913, %v2422
      %2439 = vst.msk [vmem:[#allocation2 + $0x58] sm:$0xff] %vm1913, %v2423
      %2440 = vst.msk [vmem:[#allocation2 + $0x60] sm:$0xff] %vm1913, %v2424
      %2441 = vst.msk [vmem:[#allocation2 + $0x68] sm:$0xff] %vm1913, %v2425
      %2442 = vst.msk [vmem:[#allocation2 + $0x70] sm:$0xff] %vm1913, %v2426
      %2443 = vst.msk [vmem:[#allocation2 + $0x78] sm:$0xff] %vm1913, %v2427
      %p2444 = scmp.eq.s32.totalorder %s24, 3
      %p2445 = pnand %p2444, %p408
      %p2446 = pneg %p2445
      // Predicated region
      $region57: #{tpu_custom_call.1} parent=47 // pred_check
        _
      $region58: #{tpu_custom_call.1} parent=47 // pred_check_branch
        %2448 = sbr.rel (%p2445) target = $region60
      $region59: #{tpu_custom_call.1} parent=47 // pred_region
        %v2449 = vld [vmem:[#allocation2] sm:$0xff]
        %v2450 = vld [vmem:[#allocation2 + $0x8] sm:$0xff]
        %v2451 = vld [vmem:[#allocation2 + $0x10] sm:$0xff]
        %v2452 = vld [vmem:[#allocation2 + $0x18] sm:$0xff]
        %v2453 = vld [vmem:[#allocation2 + $0x20] sm:$0xff]
        %v2454 = vld [vmem:[#allocation2 + $0x28] sm:$0xff]
        %v2455 = vld [vmem:[#allocation2 + $0x30] sm:$0xff]
        %v2456 = vld [vmem:[#allocation2 + $0x38] sm:$0xff]
        %v2457 = vld [vmem:[#allocation2 + $0x40] sm:$0xff]
        %v2458 = vld [vmem:[#allocation2 + $0x48] sm:$0xff]
        %v2459 = vld [vmem:[#allocation2 + $0x50] sm:$0xff]
        %v2460 = vld [vmem:[#allocation2 + $0x58] sm:$0xff]
        %v2461 = vld [vmem:[#allocation2 + $0x60] sm:$0xff]
        %v2462 = vld [vmem:[#allocation2 + $0x68] sm:$0xff]
        %v2463 = vld [vmem:[#allocation2 + $0x70] sm:$0xff]
        %v2464 = vld [vmem:[#allocation2 + $0x78] sm:$0xff]
        %2465 = vst.msk [vmem:[%s405] sm:$0xff] %vm1913, %v2449
        %2466 = vst.msk [vmem:[%s405 + $0x8] sm:$0xff] %vm1913, %v2450
        %2467 = vst.msk [vmem:[%s405 + $0x10] sm:$0xff] %vm1913, %v2451
        %2468 = vst.msk [vmem:[%s405 + $0x18] sm:$0xff] %vm1913, %v2452
        %2469 = vst.msk [vmem:[%s405 + $0x20] sm:$0xff] %vm1913, %v2453
        %2470 = vst.msk [vmem:[%s405 + $0x28] sm:$0xff] %vm1913, %v2454
        %2471 = vst.msk [vmem:[%s405 + $0x30] sm:$0xff] %vm1913, %v2455
        %2472 = vst.msk [vmem:[%s405 + $0x38] sm:$0xff] %vm1913, %v2456
        %2473 = vst.msk [vmem:[%s405 + $0x40] sm:$0xff] %vm1913, %v2457
        %2474 = vst.msk [vmem:[%s405 + $0x48] sm:$0xff] %vm1913, %v2458
        %2475 = vst.msk [vmem:[%s405 + $0x50] sm:$0xff] %vm1913, %v2459
        %2476 = vst.msk [vmem:[%s405 + $0x58] sm:$0xff] %vm1913, %v2460
        %2477 = vst.msk [vmem:[%s405 + $0x60] sm:$0xff] %vm1913, %v2461
        %2478 = vst.msk [vmem:[%s405 + $0x68] sm:$0xff] %vm1913, %v2462
        %2479 = vst.msk [vmem:[%s405 + $0x70] sm:$0xff] %vm1913, %v2463
        %2480 = vst.msk [vmem:[%s405 + $0x78] sm:$0xff] %vm1913, %v2464
      $region60: #{tpu_custom_call.1} parent=47 // pred_fallthru
        _
      %s2481 = smul.u32 16, %s23
      %p2482 = scmp.lt.s32.totalorder %s2481, 15
      %s2483 = scalar_select %p2482, %s2481, 15
      %s2484 = smul.addr %s2483, 8
      %s2485 = scalar_lea.vmem %s7, %s2484
      // Predicated region
      $region61: #{tpu_custom_call.1} parent=47 // pred_check
        %p2486 = pneg %p233
      $region62: #{tpu_custom_call.1} parent=47 // pred_check_branch
        %2488 = sbr.rel (%p2486) target = $region64
      $region63: #{tpu_custom_call.1} parent=47 // pred_region
        %s2489 = smul.u32 16, %s23
      $region64: #{tpu_custom_call.1} parent=47 // pred_fallthru
        _
      // Predicated region
      $region65: #{tpu_custom_call.1} parent=47 // pred_check
        %p2490 = pneg %p233
      $region66: #{tpu_custom_call.1} parent=47 // pred_check_branch
        %2492 = sbr.rel (%p2490) target = $region68
      $region67: #{tpu_custom_call.1} parent=47 // pred_region
        %s2493 = smul.u32 16, %s23
        %p2494 = scmp.lt.s32.totalorder %s2493, 15
        %s2495 = scalar_select %p2494, %s2493, 15
        %s2496 = smul.addr %s2495, 8
        %s2497 = scalar_lea.vmem %s7, %s2496
      $region68: #{tpu_custom_call.1} parent=47 // pred_fallthru
        _
    $region48: #{tpu_custom_call.1} parent=5 // pred_fallthru
      _
    %p2498 = scmp.le.s32.totalorder 2, %s13
    // Predicated region
    $region69: #{tpu_custom_call.1} parent=5 // pred_check
      %p2499 = pneg %p2498
    $region70: #{tpu_custom_call.1} parent=5 // pred_check_branch
      %2501 = sbr.rel (%p2499) target = $region72
    $region71: #{tpu_custom_call.1} parent=5 // pred_region
      %s2502 = ssub.s32 %s13, 2
    $region72: #{tpu_custom_call.1} parent=5 // pred_fallthru
      _
  $region6: #{tpu_custom_call.1} parent=0 // loop_footer
    %s17 = sadd.s32 1, %s13
  $region7: #{tpu_custom_call.1} parent=0 // loop_footer_branch
    %12 = sbr.rel target = $region3
  $region8: #{tpu_custom_call.1} parent=0 // loop_exit
    _

</llo_original>
